<compile_context>
chip_gen: v7x
topology: tpu7x:2x2x1
jax: 0.10.0
libtpu: 0.0.40
codegen_flags: <defaults>
</compile_context>

<pallas_src>
import functools
import math

import jax
import jax.numpy as jnp
from jax.experimental import pallas as pl
from jax.experimental.pallas import tpu as pltpu


# ----------------------------- Pallas kernel ------------------------------ #

def _layer_norm(v, gamma, beta, eps=1e-5):
    mu = jnp.mean(v, axis=-1, keepdims=True)
    var = jnp.mean((v - mu) ** 2, axis=-1, keepdims=True)
    return (v - mu) * jax.lax.rsqrt(var + eps) * gamma + beta


def encoder_stack_kernel(
    x_ref, mask_ref,
    wqkv_ref, wo_ref, bo_ref,
    g1_ref, be1_ref,
    w1_ref, b1_ref, w2_ref, b2_ref,
    g2_ref, be2_ref,
    o_ref,
    ctx_scr,
    *, heads: int,
):
    """Grid = (batch_block, layer).  o_ref carries the activation across layers."""
    layer = pl.program_id(1)

    # At the first layer of this batch block, seed the resident activation
    # (the output VMEM block, revisited across the layer axis).
    @pl.when(layer == 0)
    def _():
        o_ref[...] = x_ref[...]

    bn, S, E = o_ref.shape
    hd = E // heads

    x = o_ref[...].astype(jnp.float32).reshape(bn * S, E)      # (bn*S, E) f32
    xb = x.astype(jnp.bfloat16)

    # --- fused QKV projection (one K=E, N=3E matmul; 1/sqrt(hd) pre-folded) ---
    qkv = jnp.dot(xb, wqkv_ref[...], preferred_element_type=jnp.float32)
    q = qkv[:, :E].astype(jnp.bfloat16).reshape(bn, S, E)
    k = qkv[:, E:2 * E].astype(jnp.bfloat16).reshape(bn, S, E)
    v = qkv[:, 2 * E:].astype(jnp.bfloat16).reshape(bn, S, E)

    # Hoisted additive mask term: (bn, 1, S) broadcasts over query rows.
    neg_mask = mask_ref[...].astype(jnp.float32) * (-1e9)

    # --- multi-head attention, batched over the whole batch block ---
    # Each head's context goes into its lane slice of a VMEM scratch; the output
    # projection is then a single K=E matmul (no per-head K=hd dots, no wo row
    # slicing).  Per-iteration intermediates (logits/p/ctx) die at the store.
    for h in range(heads):
        sl = slice(h * hd, (h + 1) * hd)
        qh, kh, vh = q[:, :, sl], k[:, :, sl], v[:, :, sl]      # (bn, S, hd)
        logits = jnp.einsum('nqd,nkd->nqk', qh, kh,
                            preferred_element_type=jnp.float32)  # (bn, S, S)
        logits = logits + neg_mask
        logits = logits - jnp.max(logits, axis=-1, keepdims=True)
        p = jnp.exp(logits)
        p = p * pl.reciprocal(jnp.sum(p, axis=-1, keepdims=True), approx=True)
        ctx = jnp.einsum('nqk,nkd->nqd', p.astype(jnp.bfloat16), vh,
                         preferred_element_type=jnp.float32)     # (bn, S, hd)
        ctx_scr[:, sl] = ctx.reshape(bn * S, hd)

    # TODO(synk): the reference module reshapes (N, heads, Q, hd) -> (N, Q, E)
    # WITHOUT transposing heads back before fc_out (head/query interleave); the
    # standard transposed-back head-concat order is used here instead.
    attn = jnp.dot(ctx_scr[...].astype(jnp.bfloat16), wo_ref[...],
                   preferred_element_type=jnp.float32) + bo_ref[...]

    # --- residual + LayerNorm 1 (f32) ---
    x1 = _layer_norm(attn + x, g1_ref[...], be1_ref[...])       # (bn*S, E)

    # --- feed-forward: Linear -> ReLU -> Linear ---
    h1 = jnp.dot(x1.astype(jnp.bfloat16), w1_ref[...],
                 preferred_element_type=jnp.float32) + b1_ref[...]
    h1 = jnp.maximum(h1, 0.0)
    ff = jnp.dot(h1.astype(jnp.bfloat16), w2_ref[...],
                 preferred_element_type=jnp.float32) + b2_ref[...]

    # --- residual + LayerNorm 2 (f32) ---
    out = _layer_norm(ff + x1, g2_ref[...], be2_ref[...])

    # Write back into the resident output block (next layer's input; HBM
    # writeback happens once per batch block, at the end of the layer loop).
    o_ref[...] = out.reshape(bn, S, E).astype(o_ref.dtype)


# ------------------------------- wrapper ----------------------------------- #

def _device_kind() -> str:
    try:
        return jax.devices()[0].device_kind.lower()
    except Exception:
        return ""


def encoder_pallas(x, mask, stacked, heads, *, block_n=None, vmem_limit_bytes=None):
    """x: (N, S, E) f32, mask: (N, 1, S) f32 (1.0 = masked key position)."""
    N, S, E = x.shape
    L = stacked["wqkv"].shape[0]
    H = stacked["w1"].shape[-1]

    kind = _device_kind()
    two_cores = "v7" in kind

    if block_n is None:
        # Single-TensorCore chips (v5e/v6e): one batch block => each layer's weight
        # set streams from HBM exactly once.  v7x (2 TCs): split the batch in two.
        if two_cores and N >= 2 and N % 2 == 0:
            block_n = N // 2
        else:
            block_n = N
    if N % block_n != 0:      # avoid garbage compute in padded trailing blocks
        block_n = N
    NB = N // block_n

    if vmem_limit_bytes is None:
        if "v7" in kind:
            vmem_limit_bytes = 48 * 1024 * 1024       # 64 MiB physical on v7x
        elif any(g in kind for g in ("v4", "v5", "v6")):
            vmem_limit_bytes = 100 * 1024 * 1024      # 128 MiB physical
        # else: leave the compiler default (None)

    def wspec(shape):
        nd = len(shape)
        # per-layer weight/bias: leading layer dim squeezed away, selected by l.
        return pl.BlockSpec((pl.Squeezed(),) + shape,
                            lambda b, l, _nd=nd: (l,) + (0,) * _nd)

    kernel = functools.partial(encoder_stack_kernel, heads=heads)

    return pl.pallas_call(
        kernel,
        out_shape=jax.ShapeDtypeStruct((N, S, E), x.dtype),
        grid=(NB, L),
        in_specs=[
            pl.BlockSpec((block_n, S, E), lambda b, l: (b, 0, 0)),   # x
            pl.BlockSpec((block_n, 1, S), lambda b, l: (b, 0, 0)),   # mask
            wspec((E, 3 * E)),                                        # wqkv (fused)
            wspec((E, E)),                                            # wo
            wspec((1, E)),                                            # bo
            wspec((1, E)),                                            # ln1 gamma
            wspec((1, E)),                                            # ln1 beta
            wspec((E, H)),                                            # w1
            wspec((1, H)),                                            # b1
            wspec((H, E)),                                            # w2
            wspec((1, E)),                                            # b2
            wspec((1, E)),                                            # ln2 gamma
            wspec((1, E)),                                            # ln2 beta
        ],
        out_specs=pl.BlockSpec((block_n, S, E), lambda b, l: (b, 0, 0)),
        scratch_shapes=[pltpu.VMEM((block_n * S, E), jnp.float32)],   # head-concat ctx
        compiler_params=pltpu.CompilerParams(
            dimension_semantics=("parallel", "arbitrary"),
            vmem_limit_bytes=vmem_limit_bytes),
    )(
        x, mask,
        stacked["wqkv"], stacked["wo"], stacked["bo"],
        stacked["ln1_g"], stacked["ln1_b"],
        stacked["w1"], stacked["b1"], stacked["w2"], stacked["b2"],
        stacked["ln2_g"], stacked["ln2_b"],
    )


# ----------------------------- glue (plain JAX) ---------------------------- #

def make_positional_encoding(max_len, d_model):
    position = jnp.arange(max_len, dtype=jnp.float32)[:, None]
    div_term = jnp.exp(
        jnp.arange(0, d_model, 2, dtype=jnp.float32) * (-math.log(10000.0) / d_model)
    )
    pe = jnp.zeros((max_len, d_model), jnp.float32)
    pe = pe.at[:, 0::2].set(jnp.sin(position * div_term))
    pe = pe.at[:, 1::2].set(jnp.cos(position * div_term))
    return pe  # (max_len, d_model)


def init_params(key, vocab, E, H, heads, num_layers):
    keys = jax.random.split(key, 2 + num_layers)
    emb = jax.random.normal(keys[0], (vocab, E), jnp.float32) * 0.02
    layers = []
    for li in range(num_layers):
        ks = jax.random.split(keys[2 + li], 8)
        layers.append(dict(
            wq=jax.random.normal(ks[0], (E, E), jnp.float32) * 0.05,
            wk=jax.random.normal(ks[1], (E, E), jnp.float32) * 0.05,
            wv=jax.random.normal(ks[2], (E, E), jnp.float32) * 0.05,
            wo=jax.random.normal(ks[3], (E, E), jnp.float32) * 0.05,
            bo=jax.random.normal(ks[4], (1, E), jnp.float32) * 0.01,
            ln1_g=jnp.ones((1, E), jnp.float32),
            ln1_b=jnp.zeros((1, E), jnp.float32),
            w1=jax.random.normal(ks[5], (E, H), jnp.float32) * 0.05,
            b1=jax.random.normal(ks[6], (1, H), jnp.float32) * 0.01,
            w2=jax.random.normal(ks[7], (H, E), jnp.float32) * 0.05,
            b2=jnp.zeros((1, E), jnp.float32),
            ln2_g=jnp.ones((1, E), jnp.float32),
            ln2_b=jnp.zeros((1, E), jnp.float32),
        ))
    return emb, layers


def stack_layer_params(layer_params, heads):
    """Stack per-layer params along a leading (L, ...) axis.

    Q/K/V weights are fused into a single (E, 3E) bf16 matrix per layer and the
    1/sqrt(head_dim) attention scale is folded into the Q columns host-side.
    """
    E = layer_params[0]["wq"].shape[0]
    hd = E // heads
    scale = 1.0 / math.sqrt(hd)
    out = {}
    out["wqkv"] = jnp.stack(
        [jnp.concatenate([p["wq"] * scale, p["wk"], p["wv"]], axis=1)
         for p in layer_params], axis=0).astype(jnp.bfloat16)
    for k in ("wo", "w1", "w2"):
        out[k] = jnp.stack([p[k] for p in layer_params], axis=0).astype(jnp.bfloat16)
    for k in ("bo", "ln1_g", "ln1_b", "b1", "b2", "ln2_g", "ln2_b"):
        out[k] = jnp.stack([p[k] for p in layer_params], axis=0)
    return out


def encoder_forward(tokens, mask, emb_table, pe, stacked, heads):
    # word embedding + positional encoding (dropout = identity at inference)
    S = tokens.shape[1]
    x = emb_table[tokens] + pe[:S][None, :, :]          # (N, S, E)
    return encoder_pallas(x, mask, stacked, heads)      # whole stack, one launch


# ----------------------------------- main ---------------------------------- #

if __name__ == "__main__":
    # small shapes consistent with the module
    N, S, E, heads = 2, 8, 32, 4
    forward_expansion = 4
    H = forward_expansion * E                 # 128
    num_layers = 2
    vocab = 50
    max_len = 16

    key = jax.random.PRNGKey(0)
    k_tok, k_par = jax.random.split(key)

    tokens = jax.random.randint(k_tok, (N, S), 0, vocab, dtype=jnp.int32)
    # additive key-padding mask, broadcast over heads & query positions:
    # shape (N, 1, S), 1.0 = masked (mask last key of second sequence)
    mask = jnp.zeros((N, 1, S), jnp.float32).at[1, 0, S - 1].set(1.0)

    pe = make_positional_encoding(max_len, E)
    emb_table, layer_params = init_params(k_par, vocab, E, H, heads, num_layers)
    stacked = stack_layer_params(layer_params, heads)

    out = encoder_forward(tokens, mask, emb_table, pe, stacked, heads)
    out = jax.block_until_ready(out)
    assert out.shape == (N, S, E) and out.dtype == jnp.float32
    assert bool(jnp.all(jnp.isfinite(out)))
    # TODO(synk): dropout layers are treated as identity (inference mode);
    #             embedding gather + positional encoding are plain-JAX glue.
    print("KERNEL_OK")
</pallas_src>

<mosaic_0001>
module attributes {stable_mosaic.version = 11 : i64} {
  func.func @encoder_stack_kernel(%arg0: i32, %arg1: i32, %arg2: memref<2x8x32xf32, #tpu.memory_space<vmem>>, %arg3: memref<2x1x8xf32, #tpu.memory_space<vmem>>, %arg4: memref<1x32x96xbf16, #tpu.memory_space<vmem>>, %arg5: memref<1x32x32xbf16, #tpu.memory_space<vmem>>, %arg6: memref<1x1x32xf32, #tpu.memory_space<vmem>>, %arg7: memref<1x1x32xf32, #tpu.memory_space<vmem>>, %arg8: memref<1x1x32xf32, #tpu.memory_space<vmem>>, %arg9: memref<1x32x128xbf16, #tpu.memory_space<vmem>>, %arg10: memref<1x1x128xf32, #tpu.memory_space<vmem>>, %arg11: memref<1x128x32xbf16, #tpu.memory_space<vmem>>, %arg12: memref<1x1x32xf32, #tpu.memory_space<vmem>>, %arg13: memref<1x1x32xf32, #tpu.memory_space<vmem>>, %arg14: memref<1x1x32xf32, #tpu.memory_space<vmem>>, %arg15: memref<2x8x32xf32, #tpu.memory_space<vmem>>, %arg16: memref<16x32xf32, #tpu.memory_space<vmem>>) attributes {dimension_semantics = [#tpu.dimension_semantics<parallel>, #tpu.dimension_semantics<arbitrary>], iteration_bounds = array<i64: 1, 2>, scalar_prefetch = 0 : i64, scratch_operands = 1 : i64, tpu.core_type = #tpu.core_type<tc>, window_params = [{transform_indices = @transform_0, window_bounds = array<i64: 2, 8, 32>}, {transform_indices = @transform_1, window_bounds = array<i64: 2, 1, 8>}, {transform_indices = @transform_2, window_bounds = array<i64: 1, 32, 96>}, {transform_indices = @transform_3, window_bounds = array<i64: 1, 32, 32>}, {transform_indices = @transform_4, window_bounds = array<i64: 1, 1, 32>}, {transform_indices = @transform_5, window_bounds = array<i64: 1, 1, 32>}, {transform_indices = @transform_6, window_bounds = array<i64: 1, 1, 32>}, {transform_indices = @transform_7, window_bounds = array<i64: 1, 32, 128>}, {transform_indices = @transform_8, window_bounds = array<i64: 1, 1, 128>}, {transform_indices = @transform_9, window_bounds = array<i64: 1, 128, 32>}, {transform_indices = @transform_10, window_bounds = array<i64: 1, 1, 32>}, {transform_indices = @transform_11, window_bounds = array<i64: 1, 1, 32>}, {transform_indices = @transform_12, window_bounds = array<i64: 1, 1, 32>}, {transform_indices = @transform_13, window_bounds = array<i64: 2, 8, 32>}]} {
    %c0_i32 = arith.constant 0 : i32
    %0 = arith.cmpi eq, %arg1, %c0_i32 : i32
    %1 = arith.extui %0 : i1 to i32
    %c0_i32_0 = arith.constant 0 : i32
    %2 = arith.cmpi ne, %1, %c0_i32_0 : i32
    scf.if %2 {
      %c0_80 = arith.constant 0 : index
      %c0_81 = arith.constant 0 : index
      %c0_82 = arith.constant 0 : index
      %184 = vector.load %arg2[%c0_80, %c0_81, %c0_82] : memref<2x8x32xf32, #tpu.memory_space<vmem>>, vector<2x8x32xf32>
      %c0_83 = arith.constant 0 : index
      %c0_84 = arith.constant 0 : index
      %c0_85 = arith.constant 0 : index
      %185 = vector.load %arg15[%c0_83, %c0_84, %c0_85] : memref<2x8x32xf32, #tpu.memory_space<vmem>>, vector<2x8x32xf32>
      tpu.vector_store %arg15[%c0_83, %c0_84, %c0_85], %184 {strides = array<i32>} : memref<2x8x32xf32, #tpu.memory_space<vmem>>, vector<2x8x32xf32>,
    } else {
    }
    %c0 = arith.constant 0 : index
    %c0_1 = arith.constant 0 : index
    %c0_2 = arith.constant 0 : index
    %3 = vector.load %arg15[%c0, %c0_1, %c0_2] : memref<2x8x32xf32, #tpu.memory_space<vmem>>, vector<2x8x32xf32>
    %4 = vector.shape_cast %3 : vector<2x8x32xf32> to vector<16x32xf32>
    %5 = arith.truncf %4 : vector<16x32xf32> to vector<16x32xbf16>
    %c0_3 = arith.constant 0 : index
    %c0_4 = arith.constant 0 : index
    %c0_5 = arith.constant 0 : index
    %6 = vector.load %arg4[%c0_3, %c0_4, %c0_5] : memref<1x32x96xbf16, #tpu.memory_space<vmem>>, vector<1x32x96xbf16>
    %7 = vector.shape_cast %6 : vector<1x32x96xbf16> to vector<32x96xbf16>
    %cst = arith.constant dense<0.000000e+00> : vector<16x96xf32>
    %8 = tpu.matmul %5, %7, %cst {dimension_numbers = #tpu.dot_dimension_numbers<[1], [0], [0], [1], [0, 0, 1, 1], [], []>} : vector<16x32xbf16>, vector<32x96xbf16>, vector<16x96xf32> -> vector<16x96xf32>
    %9 = vector.extract_strided_slice %8 {offsets = [0, 0], sizes = [16, 32], strides = [1, 1]} : vector<16x96xf32> to vector<16x32xf32>
    %10 = arith.truncf %9 : vector<16x32xf32> to vector<16x32xbf16>
    %11 = vector.shape_cast %10 : vector<16x32xbf16> to vector<2x8x32xbf16>
    %12 = vector.extract_strided_slice %8 {offsets = [0, 32], sizes = [16, 32], strides = [1, 1]} : vector<16x96xf32> to vector<16x32xf32>
    %13 = arith.truncf %12 : vector<16x32xf32> to vector<16x32xbf16>
    %14 = vector.shape_cast %13 : vector<16x32xbf16> to vector<2x8x32xbf16>
    %15 = vector.extract_strided_slice %8 {offsets = [0, 64], sizes = [16, 32], strides = [1, 1]} : vector<16x96xf32> to vector<16x32xf32>
    %16 = arith.truncf %15 : vector<16x32xf32> to vector<16x32xbf16>
    %17 = vector.shape_cast %16 : vector<16x32xbf16> to vector<2x8x32xbf16>
    %c0_6 = arith.constant 0 : index
    %c0_7 = arith.constant 0 : index
    %c0_8 = arith.constant 0 : index
    %18 = vector.load %arg3[%c0_6, %c0_7, %c0_8] : memref<2x1x8xf32, #tpu.memory_space<vmem>>, vector<2x1x8xf32>
    %cst_9 = arith.constant -1.000000e+09 : f32
    %19 = vector.broadcast %cst_9 : f32 to vector<2x1x8xf32>
    %20 = arith.mulf %18, %19 : vector<2x1x8xf32>
    %21 = vector.extract_strided_slice %11 {offsets = [0, 0, 0], sizes = [2, 8, 8], strides = [1, 1, 1]} : vector<2x8x32xbf16> to vector<2x8x8xbf16>
    %22 = vector.extract_strided_slice %14 {offsets = [0, 0, 0], sizes = [2, 8, 8], strides = [1, 1, 1]} : vector<2x8x32xbf16> to vector<2x8x8xbf16>
    %23 = vector.extract_strided_slice %17 {offsets = [0, 0, 0], sizes = [2, 8, 8], strides = [1, 1, 1]} : vector<2x8x32xbf16> to vector<2x8x8xbf16>
    "tpu.trace_start"() <{level = 10 : i32, message = "nqd,nkd->nqk"}> : () -> ()
    %cst_10 = arith.constant dense<0.000000e+00> : vector<2x8x8xf32>
    %24 = tpu.matmul %21, %22, %cst_10 {dimension_numbers = #tpu.dot_dimension_numbers<[2], [2], [1], [1], [0, 0, 0, 1, 1, 1], [0], [0]>} : vector<2x8x8xbf16>, vector<2x8x8xbf16>, vector<2x8x8xf32> -> vector<2x8x8xf32>
    "tpu.trace_stop"() : () -> ()
    %25 = vector.broadcast %20 : vector<2x1x8xf32> to vector<2x8x8xf32>
    %26 = arith.addf %24, %25 : vector<2x8x8xf32>
    %cst_11 = arith.constant dense<0xFF800000> : vector<2x8xf32>
    %27 = vector.multi_reduction <maximumf>, %26, %cst_11 [2] : vector<2x8x8xf32> to vector<2x8xf32>
    %28 = vector.shape_cast %27 : vector<2x8xf32> to vector<2x8x1xf32>
    %29 = vector.broadcast %28 : vector<2x8x1xf32> to vector<2x8x8xf32>
    %30 = arith.subf %26, %29 : vector<2x8x8xf32>
    %31 = math.exp %30 : vector<2x8x8xf32>
    %cst_12 = arith.constant dense<0.000000e+00> : vector<2x8xf32>
    %32 = vector.multi_reduction <add>, %31, %cst_12 [2] : vector<2x8x8xf32> to vector<2x8xf32>
    %33 = vector.shape_cast %32 : vector<2x8xf32> to vector<2x8x1xf32>
    %34 = tpu.reciprocal %33 {approx = true} : vector<2x8x1xf32> -> vector<2x8x1xf32>
    %35 = vector.broadcast %34 : vector<2x8x1xf32> to vector<2x8x8xf32>
    %36 = arith.mulf %31, %35 : vector<2x8x8xf32>
    %37 = arith.truncf %36 : vector<2x8x8xf32> to vector<2x8x8xbf16>
    "tpu.trace_start"() <{level = 10 : i32, message = "nqk,nkd->nqd"}> : () -> ()
    %cst_13 = arith.constant dense<0.000000e+00> : vector<2x8x8xf32>
    %38 = tpu.matmul %37, %23, %cst_13 {dimension_numbers = #tpu.dot_dimension_numbers<[2], [1], [1], [2], [0, 0, 0, 1, 1, 2], [0], [0]>} : vector<2x8x8xbf16>, vector<2x8x8xbf16>, vector<2x8x8xf32> -> vector<2x8x8xf32>
    "tpu.trace_stop"() : () -> ()
    %39 = vector.shape_cast %38 : vector<2x8x8xf32> to vector<16x8xf32>
    %c0_14 = arith.constant 0 : index
    %c0_15 = arith.constant 0 : index
    %40 = vector.load %arg16[%c0_14, %c0_15] : memref<16x32xf32, #tpu.memory_space<vmem>>, vector<16x8xf32>
    tpu.vector_store %arg16[%c0_14, %c0_15], %39 {strides = array<i32>} : memref<16x32xf32, #tpu.memory_space<vmem>>, vector<16x8xf32>,
    %41 = vector.extract_strided_slice %11 {offsets = [0, 0, 8], sizes = [2, 8, 8], strides = [1, 1, 1]} : vector<2x8x32xbf16> to vector<2x8x8xbf16>
    %42 = vector.extract_strided_slice %14 {offsets = [0, 0, 8], sizes = [2, 8, 8], strides = [1, 1, 1]} : vector<2x8x32xbf16> to vector<2x8x8xbf16>
    %43 = vector.extract_strided_slice %17 {offsets = [0, 0, 8], sizes = [2, 8, 8], strides = [1, 1, 1]} : vector<2x8x32xbf16> to vector<2x8x8xbf16>
    "tpu.trace_start"() <{level = 10 : i32, message = "nqd,nkd->nqk"}> : () -> ()
    %cst_16 = arith.constant dense<0.000000e+00> : vector<2x8x8xf32>
    %44 = tpu.matmul %41, %42, %cst_16 {dimension_numbers = #tpu.dot_dimension_numbers<[2], [2], [1], [1], [0, 0, 0, 1, 1, 1], [0], [0]>} : vector<2x8x8xbf16>, vector<2x8x8xbf16>, vector<2x8x8xf32> -> vector<2x8x8xf32>
    "tpu.trace_stop"() : () -> ()
    %45 = vector.broadcast %20 : vector<2x1x8xf32> to vector<2x8x8xf32>
    %46 = arith.addf %44, %45 : vector<2x8x8xf32>
    %cst_17 = arith.constant dense<0xFF800000> : vector<2x8xf32>
    %47 = vector.multi_reduction <maximumf>, %46, %cst_17 [2] : vector<2x8x8xf32> to vector<2x8xf32>
    %48 = vector.shape_cast %47 : vector<2x8xf32> to vector<2x8x1xf32>
    %49 = vector.broadcast %48 : vector<2x8x1xf32> to vector<2x8x8xf32>
    %50 = arith.subf %46, %49 : vector<2x8x8xf32>
    %51 = math.exp %50 : vector<2x8x8xf32>
    %cst_18 = arith.constant dense<0.000000e+00> : vector<2x8xf32>
    %52 = vector.multi_reduction <add>, %51, %cst_18 [2] : vector<2x8x8xf32> to vector<2x8xf32>
    %53 = vector.shape_cast %52 : vector<2x8xf32> to vector<2x8x1xf32>
    %54 = tpu.reciprocal %53 {approx = true} : vector<2x8x1xf32> -> vector<2x8x1xf32>
    %55 = vector.broadcast %54 : vector<2x8x1xf32> to vector<2x8x8xf32>
    %56 = arith.mulf %51, %55 : vector<2x8x8xf32>
    %57 = arith.truncf %56 : vector<2x8x8xf32> to vector<2x8x8xbf16>
    "tpu.trace_start"() <{level = 10 : i32, message = "nqk,nkd->nqd"}> : () -> ()
    %cst_19 = arith.constant dense<0.000000e+00> : vector<2x8x8xf32>
    %58 = tpu.matmul %57, %43, %cst_19 {dimension_numbers = #tpu.dot_dimension_numbers<[2], [1], [1], [2], [0, 0, 0, 1, 1, 2], [0], [0]>} : vector<2x8x8xbf16>, vector<2x8x8xbf16>, vector<2x8x8xf32> -> vector<2x8x8xf32>
    "tpu.trace_stop"() : () -> ()
    %59 = vector.shape_cast %58 : vector<2x8x8xf32> to vector<16x8xf32>
    %c0_20 = arith.constant 0 : index
    %c8 = arith.constant 8 : index
    %60 = vector.load %arg16[%c0_20, %c8] : memref<16x32xf32, #tpu.memory_space<vmem>>, vector<16x8xf32>
    tpu.vector_store %arg16[%c0_20, %c8], %59 {strides = array<i32>} : memref<16x32xf32, #tpu.memory_space<vmem>>, vector<16x8xf32>,
    %61 = vector.extract_strided_slice %11 {offsets = [0, 0, 16], sizes = [2, 8, 8], strides = [1, 1, 1]} : vector<2x8x32xbf16> to vector<2x8x8xbf16>
    %62 = vector.extract_strided_slice %14 {offsets = [0, 0, 16], sizes = [2, 8, 8], strides = [1, 1, 1]} : vector<2x8x32xbf16> to vector<2x8x8xbf16>
    %63 = vector.extract_strided_slice %17 {offsets = [0, 0, 16], sizes = [2, 8, 8], strides = [1, 1, 1]} : vector<2x8x32xbf16> to vector<2x8x8xbf16>
    "tpu.trace_start"() <{level = 10 : i32, message = "nqd,nkd->nqk"}> : () -> ()
    %cst_21 = arith.constant dense<0.000000e+00> : vector<2x8x8xf32>
    %64 = tpu.matmul %61, %62, %cst_21 {dimension_numbers = #tpu.dot_dimension_numbers<[2], [2], [1], [1], [0, 0, 0, 1, 1, 1], [0], [0]>} : vector<2x8x8xbf16>, vector<2x8x8xbf16>, vector<2x8x8xf32> -> vector<2x8x8xf32>
    "tpu.trace_stop"() : () -> ()
    %65 = vector.broadcast %20 : vector<2x1x8xf32> to vector<2x8x8xf32>
    %66 = arith.addf %64, %65 : vector<2x8x8xf32>
    %cst_22 = arith.constant dense<0xFF800000> : vector<2x8xf32>
    %67 = vector.multi_reduction <maximumf>, %66, %cst_22 [2] : vector<2x8x8xf32> to vector<2x8xf32>
    %68 = vector.shape_cast %67 : vector<2x8xf32> to vector<2x8x1xf32>
    %69 = vector.broadcast %68 : vector<2x8x1xf32> to vector<2x8x8xf32>
    %70 = arith.subf %66, %69 : vector<2x8x8xf32>
    %71 = math.exp %70 : vector<2x8x8xf32>
    %cst_23 = arith.constant dense<0.000000e+00> : vector<2x8xf32>
    %72 = vector.multi_reduction <add>, %71, %cst_23 [2] : vector<2x8x8xf32> to vector<2x8xf32>
    %73 = vector.shape_cast %72 : vector<2x8xf32> to vector<2x8x1xf32>
    %74 = tpu.reciprocal %73 {approx = true} : vector<2x8x1xf32> -> vector<2x8x1xf32>
    %75 = vector.broadcast %74 : vector<2x8x1xf32> to vector<2x8x8xf32>
    %76 = arith.mulf %71, %75 : vector<2x8x8xf32>
    %77 = arith.truncf %76 : vector<2x8x8xf32> to vector<2x8x8xbf16>
    "tpu.trace_start"() <{level = 10 : i32, message = "nqk,nkd->nqd"}> : () -> ()
    %cst_24 = arith.constant dense<0.000000e+00> : vector<2x8x8xf32>
    %78 = tpu.matmul %77, %63, %cst_24 {dimension_numbers = #tpu.dot_dimension_numbers<[2], [1], [1], [2], [0, 0, 0, 1, 1, 2], [0], [0]>} : vector<2x8x8xbf16>, vector<2x8x8xbf16>, vector<2x8x8xf32> -> vector<2x8x8xf32>
    "tpu.trace_stop"() : () -> ()
    %79 = vector.shape_cast %78 : vector<2x8x8xf32> to vector<16x8xf32>
    %c0_25 = arith.constant 0 : index
    %c16 = arith.constant 16 : index
    %80 = vector.load %arg16[%c0_25, %c16] : memref<16x32xf32, #tpu.memory_space<vmem>>, vector<16x8xf32>
    tpu.vector_store %arg16[%c0_25, %c16], %79 {strides = array<i32>} : memref<16x32xf32, #tpu.memory_space<vmem>>, vector<16x8xf32>,
    %81 = vector.extract_strided_slice %11 {offsets = [0, 0, 24], sizes = [2, 8, 8], strides = [1, 1, 1]} : vector<2x8x32xbf16> to vector<2x8x8xbf16>
    %82 = vector.extract_strided_slice %14 {offsets = [0, 0, 24], sizes = [2, 8, 8], strides = [1, 1, 1]} : vector<2x8x32xbf16> to vector<2x8x8xbf16>
    %83 = vector.extract_strided_slice %17 {offsets = [0, 0, 24], sizes = [2, 8, 8], strides = [1, 1, 1]} : vector<2x8x32xbf16> to vector<2x8x8xbf16>
    "tpu.trace_start"() <{level = 10 : i32, message = "nqd,nkd->nqk"}> : () -> ()
    %cst_26 = arith.constant dense<0.000000e+00> : vector<2x8x8xf32>
    %84 = tpu.matmul %81, %82, %cst_26 {dimension_numbers = #tpu.dot_dimension_numbers<[2], [2], [1], [1], [0, 0, 0, 1, 1, 1], [0], [0]>} : vector<2x8x8xbf16>, vector<2x8x8xbf16>, vector<2x8x8xf32> -> vector<2x8x8xf32>
    "tpu.trace_stop"() : () -> ()
    %85 = vector.broadcast %20 : vector<2x1x8xf32> to vector<2x8x8xf32>
    %86 = arith.addf %84, %85 : vector<2x8x8xf32>
    %cst_27 = arith.constant dense<0xFF800000> : vector<2x8xf32>
    %87 = vector.multi_reduction <maximumf>, %86, %cst_27 [2] : vector<2x8x8xf32> to vector<2x8xf32>
    %88 = vector.shape_cast %87 : vector<2x8xf32> to vector<2x8x1xf32>
    %89 = vector.broadcast %88 : vector<2x8x1xf32> to vector<2x8x8xf32>
    %90 = arith.subf %86, %89 : vector<2x8x8xf32>
    %91 = math.exp %90 : vector<2x8x8xf32>
    %cst_28 = arith.constant dense<0.000000e+00> : vector<2x8xf32>
    %92 = vector.multi_reduction <add>, %91, %cst_28 [2] : vector<2x8x8xf32> to vector<2x8xf32>
    %93 = vector.shape_cast %92 : vector<2x8xf32> to vector<2x8x1xf32>
    %94 = tpu.reciprocal %93 {approx = true} : vector<2x8x1xf32> -> vector<2x8x1xf32>
    %95 = vector.broadcast %94 : vector<2x8x1xf32> to vector<2x8x8xf32>
    %96 = arith.mulf %91, %95 : vector<2x8x8xf32>
    %97 = arith.truncf %96 : vector<2x8x8xf32> to vector<2x8x8xbf16>
    "tpu.trace_start"() <{level = 10 : i32, message = "nqk,nkd->nqd"}> : () -> ()
    %cst_29 = arith.constant dense<0.000000e+00> : vector<2x8x8xf32>
    %98 = tpu.matmul %97, %83, %cst_29 {dimension_numbers = #tpu.dot_dimension_numbers<[2], [1], [1], [2], [0, 0, 0, 1, 1, 2], [0], [0]>} : vector<2x8x8xbf16>, vector<2x8x8xbf16>, vector<2x8x8xf32> -> vector<2x8x8xf32>
    "tpu.trace_stop"() : () -> ()
    %99 = vector.shape_cast %98 : vector<2x8x8xf32> to vector<16x8xf32>
    %c0_30 = arith.constant 0 : index
    %c24 = arith.constant 24 : index
    %100 = vector.load %arg16[%c0_30, %c24] : memref<16x32xf32, #tpu.memory_space<vmem>>, vector<16x8xf32>
    tpu.vector_store %arg16[%c0_30, %c24], %99 {strides = array<i32>} : memref<16x32xf32, #tpu.memory_space<vmem>>, vector<16x8xf32>,
    %c0_31 = arith.constant 0 : index
    %c0_32 = arith.constant 0 : index
    %101 = vector.load %arg16[%c0_31, %c0_32] : memref<16x32xf32, #tpu.memory_space<vmem>>, vector<16x32xf32>
    %102 = arith.truncf %101 : vector<16x32xf32> to vector<16x32xbf16>
    %c0_33 = arith.constant 0 : index
    %c0_34 = arith.constant 0 : index
    %c0_35 = arith.constant 0 : index
    %103 = vector.load %arg5[%c0_33, %c0_34, %c0_35] : memref<1x32x32xbf16, #tpu.memory_space<vmem>>, vector<1x32x32xbf16>
    %104 = vector.shape_cast %103 : vector<1x32x32xbf16> to vector<32x32xbf16>
    %cst_36 = arith.constant dense<0.000000e+00> : vector<16x32xf32>
    %105 = tpu.matmul %102, %104, %cst_36 {dimension_numbers = #tpu.dot_dimension_numbers<[1], [0], [0], [1], [0, 0, 1, 1], [], []>} : vector<16x32xbf16>, vector<32x32xbf16>, vector<16x32xf32> -> vector<16x32xf32>
    %c0_37 = arith.constant 0 : index
    %c0_38 = arith.constant 0 : index
    %c0_39 = arith.constant 0 : index
    %106 = vector.load %arg6[%c0_37, %c0_38, %c0_39] : memref<1x1x32xf32, #tpu.memory_space<vmem>>, vector<1x1x32xf32>
    %107 = vector.shape_cast %106 : vector<1x1x32xf32> to vector<1x32xf32>
    %108 = vector.broadcast %107 : vector<1x32xf32> to vector<16x32xf32>
    %109 = arith.addf %105, %108 : vector<16x32xf32>
    %110 = arith.addf %109, %4 : vector<16x32xf32>
    %c0_40 = arith.constant 0 : index
    %c0_41 = arith.constant 0 : index
    %c0_42 = arith.constant 0 : index
    %111 = vector.load %arg7[%c0_40, %c0_41, %c0_42] : memref<1x1x32xf32, #tpu.memory_space<vmem>>, vector<1x1x32xf32>
    %112 = vector.shape_cast %111 : vector<1x1x32xf32> to vector<1x32xf32>
    %c0_43 = arith.constant 0 : index
    %c0_44 = arith.constant 0 : index
    %c0_45 = arith.constant 0 : index
    %113 = vector.load %arg8[%c0_43, %c0_44, %c0_45] : memref<1x1x32xf32, #tpu.memory_space<vmem>>, vector<1x1x32xf32>
    %114 = vector.shape_cast %113 : vector<1x1x32xf32> to vector<1x32xf32>
    %cst_46 = arith.constant dense<0.000000e+00> : vector<16xf32>
    %115 = vector.multi_reduction <add>, %110, %cst_46 [1] : vector<16x32xf32> to vector<16xf32>
    %116 = vector.shape_cast %115 : vector<16xf32> to vector<16x1xf32>
    %cst_47 = arith.constant 3.200000e+01 : f32
    %117 = vector.broadcast %cst_47 : f32 to vector<16x1xf32>
    %118 = arith.divf %116, %117 : vector<16x1xf32>
    %119 = vector.broadcast %118 : vector<16x1xf32> to vector<16x32xf32>
    %120 = arith.subf %110, %119 : vector<16x32xf32>
    %121 = arith.mulf %120, %120 : vector<16x32xf32>
    %cst_48 = arith.constant dense<0.000000e+00> : vector<16xf32>
    %122 = vector.multi_reduction <add>, %121, %cst_48 [1] : vector<16x32xf32> to vector<16xf32>
    %123 = vector.shape_cast %122 : vector<16xf32> to vector<16x1xf32>
    %cst_49 = arith.constant 3.200000e+01 : f32
    %124 = vector.broadcast %cst_49 : f32 to vector<16x1xf32>
    %125 = arith.divf %123, %124 : vector<16x1xf32>
    %126 = vector.broadcast %118 : vector<16x1xf32> to vector<16x32xf32>
    %127 = arith.subf %110, %126 : vector<16x32xf32>
    %cst_50 = arith.constant 9.99999974E-6 : f32
    %128 = vector.broadcast %cst_50 : f32 to vector<16x1xf32>
    %129 = arith.addf %125, %128 : vector<16x1xf32>
    %130 = math.rsqrt %129 : vector<16x1xf32>
    %131 = vector.broadcast %130 : vector<16x1xf32> to vector<16x32xf32>
    %132 = arith.mulf %127, %131 : vector<16x32xf32>
    %133 = vector.broadcast %112 : vector<1x32xf32> to vector<16x32xf32>
    %134 = arith.mulf %132, %133 : vector<16x32xf32>
    %135 = vector.broadcast %114 : vector<1x32xf32> to vector<16x32xf32>
    %136 = arith.addf %134, %135 : vector<16x32xf32>
    %137 = arith.truncf %136 : vector<16x32xf32> to vector<16x32xbf16>
    %c0_51 = arith.constant 0 : index
    %c0_52 = arith.constant 0 : index
    %c0_53 = arith.constant 0 : index
    %138 = vector.load %arg9[%c0_51, %c0_52, %c0_53] : memref<1x32x128xbf16, #tpu.memory_space<vmem>>, vector<1x32x128xbf16>
    %139 = vector.shape_cast %138 : vector<1x32x128xbf16> to vector<32x128xbf16>
    %cst_54 = arith.constant dense<0.000000e+00> : vector<16x128xf32>
    %140 = tpu.matmul %137, %139, %cst_54 {dimension_numbers = #tpu.dot_dimension_numbers<[1], [0], [0], [1], [0, 0, 1, 1], [], []>} : vector<16x32xbf16>, vector<32x128xbf16>, vector<16x128xf32> -> vector<16x128xf32>
    %c0_55 = arith.constant 0 : index
    %c0_56 = arith.constant 0 : index
    %c0_57 = arith.constant 0 : index
    %141 = vector.load %arg10[%c0_55, %c0_56, %c0_57] : memref<1x1x128xf32, #tpu.memory_space<vmem>>, vector<1x1x128xf32>
    %142 = vector.shape_cast %141 : vector<1x1x128xf32> to vector<1x128xf32>
    %143 = vector.broadcast %142 : vector<1x128xf32> to vector<16x128xf32>
    %144 = arith.addf %140, %143 : vector<16x128xf32>
    %cst_58 = arith.constant 0.000000e+00 : f32
    %145 = vector.broadcast %cst_58 : f32 to vector<16x128xf32>
    %146 = arith.maximumf %144, %145 : vector<16x128xf32>
    %147 = arith.truncf %146 : vector<16x128xf32> to vector<16x128xbf16>
    %c0_59 = arith.constant 0 : index
    %c0_60 = arith.constant 0 : index
    %c0_61 = arith.constant 0 : index
    %148 = vector.load %arg11[%c0_59, %c0_60, %c0_61] : memref<1x128x32xbf16, #tpu.memory_space<vmem>>, vector<1x128x32xbf16>
    %149 = vector.shape_cast %148 : vector<1x128x32xbf16> to vector<128x32xbf16>
    %cst_62 = arith.constant dense<0.000000e+00> : vector<16x32xf32>
    %150 = tpu.matmul %147, %149, %cst_62 {dimension_numbers = #tpu.dot_dimension_numbers<[1], [0], [0], [1], [0, 0, 1, 1], [], []>} : vector<16x128xbf16>, vector<128x32xbf16>, vector<16x32xf32> -> vector<16x32xf32>
    %c0_63 = arith.constant 0 : index
    %c0_64 = arith.constant 0 : index
    %c0_65 = arith.constant 0 : index
    %151 = vector.load %arg12[%c0_63, %c0_64, %c0_65] : memref<1x1x32xf32, #tpu.memory_space<vmem>>, vector<1x1x32xf32>
    %152 = vector.shape_cast %151 : vector<1x1x32xf32> to vector<1x32xf32>
    %153 = vector.broadcast %152 : vector<1x32xf32> to vector<16x32xf32>
    %154 = arith.addf %150, %153 : vector<16x32xf32>
    %155 = arith.addf %154, %136 : vector<16x32xf32>
    %c0_66 = arith.constant 0 : index
    %c0_67 = arith.constant 0 : index
    %c0_68 = arith.constant 0 : index
    %156 = vector.load %arg13[%c0_66, %c0_67, %c0_68] : memref<1x1x32xf32, #tpu.memory_space<vmem>>, vector<1x1x32xf32>
    %157 = vector.shape_cast %156 : vector<1x1x32xf32> to vector<1x32xf32>
    %c0_69 = arith.constant 0 : index
    %c0_70 = arith.constant 0 : index
    %c0_71 = arith.constant 0 : index
    %158 = vector.load %arg14[%c0_69, %c0_70, %c0_71] : memref<1x1x32xf32, #tpu.memory_space<vmem>>, vector<1x1x32xf32>
    %159 = vector.shape_cast %158 : vector<1x1x32xf32> to vector<1x32xf32>
    %cst_72 = arith.constant dense<0.000000e+00> : vector<16xf32>
    %160 = vector.multi_reduction <add>, %155, %cst_72 [1] : vector<16x32xf32> to vector<16xf32>
    %161 = vector.shape_cast %160 : vector<16xf32> to vector<16x1xf32>
    %cst_73 = arith.constant 3.200000e+01 : f32
    %162 = vector.broadcast %cst_73 : f32 to vector<16x1xf32>
    %163 = arith.divf %161, %162 : vector<16x1xf32>
    %164 = vector.broadcast %163 : vector<16x1xf32> to vector<16x32xf32>
    %165 = arith.subf %155, %164 : vector<16x32xf32>
    %166 = arith.mulf %165, %165 : vector<16x32xf32>
    %cst_74 = arith.constant dense<0.000000e+00> : vector<16xf32>
    %167 = vector.multi_reduction <add>, %166, %cst_74 [1] : vector<16x32xf32> to vector<16xf32>
    %168 = vector.shape_cast %167 : vector<16xf32> to vector<16x1xf32>
    %cst_75 = arith.constant 3.200000e+01 : f32
    %169 = vector.broadcast %cst_75 : f32 to vector<16x1xf32>
    %170 = arith.divf %168, %169 : vector<16x1xf32>
    %171 = vector.broadcast %163 : vector<16x1xf32> to vector<16x32xf32>
    %172 = arith.subf %155, %171 : vector<16x32xf32>
    %cst_76 = arith.constant 9.99999974E-6 : f32
    %173 = vector.broadcast %cst_76 : f32 to vector<16x1xf32>
    %174 = arith.addf %170, %173 : vector<16x1xf32>
    %175 = math.rsqrt %174 : vector<16x1xf32>
    %176 = vector.broadcast %175 : vector<16x1xf32> to vector<16x32xf32>
    %177 = arith.mulf %172, %176 : vector<16x32xf32>
    %178 = vector.broadcast %157 : vector<1x32xf32> to vector<16x32xf32>
    %179 = arith.mulf %177, %178 : vector<16x32xf32>
    %180 = vector.broadcast %159 : vector<1x32xf32> to vector<16x32xf32>
    %181 = arith.addf %179, %180 : vector<16x32xf32>
    %182 = vector.shape_cast %181 : vector<16x32xf32> to vector<2x8x32xf32>
    %c0_77 = arith.constant 0 : index
    %c0_78 = arith.constant 0 : index
    %c0_79 = arith.constant 0 : index
    %183 = vector.load %arg15[%c0_77, %c0_78, %c0_79] : memref<2x8x32xf32, #tpu.memory_space<vmem>>, vector<2x8x32xf32>
    tpu.vector_store %arg15[%c0_77, %c0_78, %c0_79], %182 {strides = array<i32>} : memref<2x8x32xf32, #tpu.memory_space<vmem>>, vector<2x8x32xf32>,
    return
  }
  func.func @transform_0(%arg0: i32, %arg1: i32) -> (i32, i32, i32) {
    %c0_i32 = arith.constant 0 : i32
    %c0_i32_0 = arith.constant 0 : i32
    %c0_i32_1 = arith.constant 0 : i32
    return %arg0, %c0_i32, %c0_i32_0 : i32, i32, i32
  }
  func.func @transform_1(%arg0: i32, %arg1: i32) -> (i32, i32, i32) {
    %c0_i32 = arith.constant 0 : i32
    %c0_i32_0 = arith.constant 0 : i32
    %c0_i32_1 = arith.constant 0 : i32
    return %arg0, %c0_i32, %c0_i32_0 : i32, i32, i32
  }
  func.func @transform_2(%arg0: i32, %arg1: i32) -> (i32, i32, i32) {
    %c0_i32 = arith.constant 0 : i32
    %c0_i32_0 = arith.constant 0 : i32
    %c0_i32_1 = arith.constant 0 : i32
    return %arg1, %c0_i32, %c0_i32_0 : i32, i32, i32
  }
  func.func @transform_3(%arg0: i32, %arg1: i32) -> (i32, i32, i32) {
    %c0_i32 = arith.constant 0 : i32
    %c0_i32_0 = arith.constant 0 : i32
    %c0_i32_1 = arith.constant 0 : i32
    return %arg1, %c0_i32, %c0_i32_0 : i32, i32, i32
  }
  func.func @transform_4(%arg0: i32, %arg1: i32) -> (i32, i32, i32) {
    %c0_i32 = arith.constant 0 : i32
    %c0_i32_0 = arith.constant 0 : i32
    %c0_i32_1 = arith.constant 0 : i32
    return %arg1, %c0_i32, %c0_i32_0 : i32, i32, i32
  }
  func.func @transform_5(%arg0: i32, %arg1: i32) -> (i32, i32, i32) {
    %c0_i32 = arith.constant 0 : i32
    %c0_i32_0 = arith.constant 0 : i32
    %c0_i32_1 = arith.constant 0 : i32
    return %arg1, %c0_i32, %c0_i32_0 : i32, i32, i32
  }
  func.func @transform_6(%arg0: i32, %arg1: i32) -> (i32, i32, i32) {
    %c0_i32 = arith.constant 0 : i32
    %c0_i32_0 = arith.constant 0 : i32
    %c0_i32_1 = arith.constant 0 : i32
    return %arg1, %c0_i32, %c0_i32_0 : i32, i32, i32
  }
  func.func @transform_7(%arg0: i32, %arg1: i32) -> (i32, i32, i32) {
    %c0_i32 = arith.constant 0 : i32
    %c0_i32_0 = arith.constant 0 : i32
    %c0_i32_1 = arith.constant 0 : i32
    return %arg1, %c0_i32, %c0_i32_0 : i32, i32, i32
  }
  func.func @transform_8(%arg0: i32, %arg1: i32) -> (i32, i32, i32) {
    %c0_i32 = arith.constant 0 : i32
    %c0_i32_0 = arith.constant 0 : i32
    %c0_i32_1 = arith.constant 0 : i32
    return %arg1, %c0_i32, %c0_i32_0 : i32, i32, i32
  }
  func.func @transform_9(%arg0: i32, %arg1: i32) -> (i32, i32, i32) {
    %c0_i32 = arith.constant 0 : i32
    %c0_i32_0 = arith.constant 0 : i32
    %c0_i32_1 = arith.constant 0 : i32
    return %arg1, %c0_i32, %c0_i32_0 : i32, i32, i32
  }
  func.func @transform_10(%arg0: i32, %arg1: i32) -> (i32, i32, i32) {
    %c0_i32 = arith.constant 0 : i32
    %c0_i32_0 = arith.constant 0 : i32
    %c0_i32_1 = arith.constant 0 : i32
    return %arg1, %c0_i32, %c0_i32_0 : i32, i32, i32
  }
  func.func @transform_11(%arg0: i32, %arg1: i32) -> (i32, i32, i32) {
    %c0_i32 = arith.constant 0 : i32
    %c0_i32_0 = arith.constant 0 : i32
    %c0_i32_1 = arith.constant 0 : i32
    return %arg1, %c0_i32, %c0_i32_0 : i32, i32, i32
  }
  func.func @transform_12(%arg0: i32, %arg1: i32) -> (i32, i32, i32) {
    %c0_i32 = arith.constant 0 : i32
    %c0_i32_0 = arith.constant 0 : i32
    %c0_i32_1 = arith.constant 0 : i32
    return %arg1, %c0_i32, %c0_i32_0 : i32, i32, i32
  }
  func.func @transform_13(%arg0: i32, %arg1: i32) -> (i32, i32, i32) {
    %c0_i32 = arith.constant 0 : i32
    %c0_i32_0 = arith.constant 0 : i32
    %c0_i32_1 = arith.constant 0 : i32
    return %arg0, %c0_i32, %c0_i32_0 : i32, i32, i32
  }
}

</mosaic_0001>

<llo_original>
// kernel: tpu_custom_call.1
$region0: #{tpu_custom_call.1}
  #allocation0 [shape = 'u32[]', space=smem, size = 0x4, offset = 0x4, fixed_abs, tag = 'smem constant byte address 0x4 - core index']
  #allocation1 [shape = 'u32[144,128]{1,0:T(1,128)}', space=vmem, size = 0x12000, scoped, tag = 'internal scratch']
  #allocation2 [shape = 'f32[16,32]{1,0:T(8,128)}', space=vmem, size = 0x2000, scoped, tag = 'scratch operand']
  %s0 = inlined_call_operand.vmem [shape: f32[2,8,32], index: 0, kind: input, shape index: {}]
  %s1 = inlined_call_operand.vmem [shape: f32[2,1,8], index: 1, kind: input, shape index: {}]
  %s2 = inlined_call_operand.vmem [shape: bf16[2,32,96], index: 2, kind: input, shape index: {}]
  %s3 = inlined_call_operand.vmem [shape: bf16[2,32,32], index: 3, kind: input, shape index: {}]
  %s4 = inlined_call_operand.vmem [shape: f32[2,1,32], index: 4, kind: input, shape index: {}]
  %s5 = inlined_call_operand.vmem [shape: f32[2,1,32], index: 5, kind: input, shape index: {}]
  %s6 = inlined_call_operand.vmem [shape: f32[2,1,32], index: 6, kind: input, shape index: {}]
  %s7 = inlined_call_operand.vmem [shape: bf16[2,32,128], index: 7, kind: input, shape index: {}]
  %s8 = inlined_call_operand.vmem [shape: f32[2,1,128], index: 8, kind: input, shape index: {}]
  %s9 = inlined_call_operand.vmem [shape: bf16[2,128,32], index: 9, kind: input, shape index: {}]
  %s10 = inlined_call_operand.vmem [shape: f32[2,1,32], index: 10, kind: input, shape index: {}]
  %s11 = inlined_call_operand.vmem [shape: f32[2,1,32], index: 11, kind: input, shape index: {}]
  %s12 = inlined_call_operand.vmem [shape: f32[2,1,32], index: 12, kind: input, shape index: {}]
  %s13 = inlined_call_operand.hbm [shape: f32[2,8,32], index: 13, kind: output, shape index: {}]
  %s14 = sld [smem:[#allocation0]]
  $region89: #{tpu_custom_call.1} parent=0
    _
  %s16 = ssub.s32 1, %s14
  %s17 = scalar_select 0, %s16, %s14
  $region1: #{tpu_custom_call.1} parent=0
    #allocation3 [shape = 'u8[8192]{0}', space=vmem, size = 0x2000, scoped, tag = 'output window, operand 0, single buffered']
    #allocation4 [shape = 's32[2]{0}', space=sflag, size = 0x8, scoped, tag = 'scoped memory for tpu_custom_call.1']
    %18 = vsyncpa [#allocation4], 0
    loop: start=0, step=1, limit=4
    $region2: #{tpu_custom_call.1} parent=1 // loop_pre_header
      _
    $region3: #{tpu_custom_call.1} parent=1 // loop_header
      %s20 = sphi 0, %s24
      %p21 = scmp.ge.s32.totalorder %s20, 4
      %s27 = sphi 0, %s39
      %s28 = sphi 0, %s35
      %s29 = sphi 0, %s27
      %s30 = sphi 0, %s28
      %s31 = sphi 0, %s29
      %s32 = sphi 0, %s30
      %s42 = sphi 0, %s44
      %s45 = sphi 0, %s42
      %s46 = sphi 0, %s45
      %s62 = sphi 0, %s46
      %s68 = sphi 0, %s70
      %s71 = sphi 0, %s68
      %s72 = sphi 0, %s71
      %s88 = sphi 0, %s72
      %s94 = sphi 0, %s96
      %s97 = sphi 0, %s94
      %s98 = sphi 0, %s97
      %s114 = sphi 0, %s98
      %s120 = sphi 0, %s122
      %s123 = sphi 0, %s120
      %s124 = sphi 0, %s123
      %s140 = sphi 0, %s124
      %s146 = sphi 0, %s148
      %s149 = sphi 0, %s146
      %s150 = sphi 0, %s149
      %s166 = sphi 0, %s150
      %s172 = sphi 0, %s174
      %s175 = sphi 0, %s172
      %s176 = sphi 0, %s175
      %s192 = sphi 0, %s176
      %s198 = sphi 0, %s200
      %s201 = sphi 0, %s198
      %s202 = sphi 0, %s201
      %s218 = sphi 0, %s202
      %s224 = sphi 0, %s226
      %s227 = sphi 0, %s224
      %s228 = sphi 0, %s227
      %s244 = sphi 0, %s228
      %s250 = sphi 0, %s252
      %s253 = sphi 0, %s250
      %s254 = sphi 0, %s253
      %s270 = sphi 0, %s254
      %s276 = sphi 0, %s278
      %s279 = sphi 0, %s276
      %s280 = sphi 0, %s279
      %s296 = sphi 0, %s280
      %s302 = sphi 0, %s304
      %s305 = sphi 0, %s302
      %s306 = sphi 0, %s305
      %s322 = sphi 0, %s306
      %s328 = sphi 0, %s330
      %s331 = sphi 0, %s328
      %s332 = sphi 0, %s331
      %s348 = sphi 0, %s332
      %s354 = sphi 0, %s356
      %s357 = sphi 0, %s354
      %s358 = sphi 0, %s357
      %s374 = sphi 0, %s358
      %s380 = sphi 0, %s382
      %s383 = sphi 0, %s380
      %s384 = sphi 0, %s383
      %s400 = sphi 0, %s384
    $region4: #{tpu_custom_call.1} parent=1 // loop_header_branch
      %23 = sbr.rel (%p21) target = $region8
    $region5: #{tpu_custom_call.1} parent=1 // loop_body
      %s25 = ssub.s32 %s20, 1
      %s26 = ssub.s32 %s20, 2
      %s33 = sadd.s32 1, %s28
      %p34 = scmp.ge.s32.totalorder %s33, 2
      %s35 = scalar_select %p34, 0, %s33
      %s36 = sadd.s32 1, %s27
      %s37 = scalar_select %p34, %s36, %s27
      %p38 = scmp.ge.s32.totalorder %s37, 1
      %s39 = scalar_select %p38, 0, %s37
      %s40 = ssub.s32 %s27, %s39
      %p41 = scmp.eq.s32.totalorder %s40, 0
      %s43 = sadd.s32 %s42, 1
      %s44 = scalar_select %p41, %s42, %s43
      %p47 = pneg %p41
      %p48 = scmp.eq.s32.totalorder %s20, 1
      %p49 = por %p47, %p48
      %p50 = scmp.ne.s32.totalorder %s42, %s45
      %p51 = scmp.eq.s32.totalorder %s20, 0
      %p52 = por %p50, %p51
      %p53 = scmp.ne.s32.totalorder %s42, %s45
      %p54 = scmp.eq.s32.totalorder %s25, 1
      %p55 = por %p53, %p54
      %p56 = scmp.ne.s32.totalorder %s45, %s46
      %p57 = scmp.eq.s32.totalorder %s25, 0
      %p58 = por %p56, %p57
      %p59 = scmp.ne.s32.totalorder %s45, %s46
      %p60 = scmp.eq.s32.totalorder %s26, 1
      %p61 = por %p59, %p60
      %p63 = scmp.ne.s32.totalorder %s46, %s62
      %p64 = scmp.eq.s32.totalorder %s26, 0
      %p65 = por %p63, %p64
      %s66 = ssub.s32 %s27, %s39
      %p67 = scmp.eq.s32.totalorder %s66, 0
      %s69 = sadd.s32 %s68, 1
      %s70 = scalar_select %p67, %s68, %s69
      %p73 = pneg %p67
      %p74 = scmp.eq.s32.totalorder %s20, 1
      %p75 = por %p73, %p74
      %p76 = scmp.ne.s32.totalorder %s68, %s71
      %p77 = scmp.eq.s32.totalorder %s20, 0
      %p78 = por %p76, %p77
      %p79 = scmp.ne.s32.totalorder %s68, %s71
      %p80 = scmp.eq.s32.totalorder %s25, 1
      %p81 = por %p79, %p80
      %p82 = scmp.ne.s32.totalorder %s71, %s72
      %p83 = scmp.eq.s32.totalorder %s25, 0
      %p84 = por %p82, %p83
      %p85 = scmp.ne.s32.totalorder %s71, %s72
      %p86 = scmp.eq.s32.totalorder %s26, 1
      %p87 = por %p85, %p86
      %p89 = scmp.ne.s32.totalorder %s72, %s88
      %p90 = scmp.eq.s32.totalorder %s26, 0
      %p91 = por %p89, %p90
      %s92 = ssub.s32 %s28, %s35
      %p93 = scmp.eq.s32.totalorder %s92, 0
      %s95 = sadd.s32 %s94, 1
      %s96 = scalar_select %p93, %s94, %s95
      %p99 = pneg %p93
      %p100 = scmp.eq.s32.totalorder %s20, 1
      %p101 = por %p99, %p100
      %p102 = scmp.ne.s32.totalorder %s94, %s97
      %p103 = scmp.eq.s32.totalorder %s20, 0
      %p104 = por %p102, %p103
      %p105 = scmp.ne.s32.totalorder %s94, %s97
      %p106 = scmp.eq.s32.totalorder %s25, 1
      %p107 = por %p105, %p106
      %p108 = scmp.ne.s32.totalorder %s97, %s98
      %p109 = scmp.eq.s32.totalorder %s25, 0
      %p110 = por %p108, %p109
      %p111 = scmp.ne.s32.totalorder %s97, %s98
      %p112 = scmp.eq.s32.totalorder %s26, 1
      %p113 = por %p111, %p112
      %p115 = scmp.ne.s32.totalorder %s98, %s114
      %p116 = scmp.eq.s32.totalorder %s26, 0
      %p117 = por %p115, %p116
      %s118 = ssub.s32 %s28, %s35
      %p119 = scmp.eq.s32.totalorder %s118, 0
      %s121 = sadd.s32 %s120, 1
      %s122 = scalar_select %p119, %s120, %s121
      %p125 = pneg %p119
      %p126 = scmp.eq.s32.totalorder %s20, 1
      %p127 = por %p125, %p126
      %p128 = scmp.ne.s32.totalorder %s120, %s123
      %p129 = scmp.eq.s32.totalorder %s20, 0
      %p130 = por %p128, %p129
      %p131 = scmp.ne.s32.totalorder %s120, %s123
      %p132 = scmp.eq.s32.totalorder %s25, 1
      %p133 = por %p131, %p132
      %p134 = scmp.ne.s32.totalorder %s123, %s124
      %p135 = scmp.eq.s32.totalorder %s25, 0
      %p136 = por %p134, %p135
      %p137 = scmp.ne.s32.totalorder %s123, %s124
      %p138 = scmp.eq.s32.totalorder %s26, 1
      %p139 = por %p137, %p138
      %p141 = scmp.ne.s32.totalorder %s124, %s140
      %p142 = scmp.eq.s32.totalorder %s26, 0
      %p143 = por %p141, %p142
      %s144 = ssub.s32 %s28, %s35
      %p145 = scmp.eq.s32.totalorder %s144, 0
      %s147 = sadd.s32 %s146, 1
      %s148 = scalar_select %p145, %s146, %s147
      %p151 = pneg %p145
      %p152 = scmp.eq.s32.totalorder %s20, 1
      %p153 = por %p151, %p152
      %p154 = scmp.ne.s32.totalorder %s146, %s149
      %p155 = scmp.eq.s32.totalorder %s20, 0
      %p156 = por %p154, %p155
      %p157 = scmp.ne.s32.totalorder %s146, %s149
      %p158 = scmp.eq.s32.totalorder %s25, 1
      %p159 = por %p157, %p158
      %p160 = scmp.ne.s32.totalorder %s149, %s150
      %p161 = scmp.eq.s32.totalorder %s25, 0
      %p162 = por %p160, %p161
      %p163 = scmp.ne.s32.totalorder %s149, %s150
      %p164 = scmp.eq.s32.totalorder %s26, 1
      %p165 = por %p163, %p164
      %p167 = scmp.ne.s32.totalorder %s150, %s166
      %p168 = scmp.eq.s32.totalorder %s26, 0
      %p169 = por %p167, %p168
      %s170 = ssub.s32 %s28, %s35
      %p171 = scmp.eq.s32.totalorder %s170, 0
      %s173 = sadd.s32 %s172, 1
      %s174 = scalar_select %p171, %s172, %s173
      %p177 = pneg %p171
      %p178 = scmp.eq.s32.totalorder %s20, 1
      %p179 = por %p177, %p178
      %p180 = scmp.ne.s32.totalorder %s172, %s175
      %p181 = scmp.eq.s32.totalorder %s20, 0
      %p182 = por %p180, %p181
      %p183 = scmp.ne.s32.totalorder %s172, %s175
      %p184 = scmp.eq.s32.totalorder %s25, 1
      %p185 = por %p183, %p184
      %p186 = scmp.ne.s32.totalorder %s175, %s176
      %p187 = scmp.eq.s32.totalorder %s25, 0
      %p188 = por %p186, %p187
      %p189 = scmp.ne.s32.totalorder %s175, %s176
      %p190 = scmp.eq.s32.totalorder %s26, 1
      %p191 = por %p189, %p190
      %p193 = scmp.ne.s32.totalorder %s176, %s192
      %p194 = scmp.eq.s32.totalorder %s26, 0
      %p195 = por %p193, %p194
      %s196 = ssub.s32 %s28, %s35
      %p197 = scmp.eq.s32.totalorder %s196, 0
      %s199 = sadd.s32 %s198, 1
      %s200 = scalar_select %p197, %s198, %s199
      %p203 = pneg %p197
      %p204 = scmp.eq.s32.totalorder %s20, 1
      %p205 = por %p203, %p204
      %p206 = scmp.ne.s32.totalorder %s198, %s201
      %p207 = scmp.eq.s32.totalorder %s20, 0
      %p208 = por %p206, %p207
      %p209 = scmp.ne.s32.totalorder %s198, %s201
      %p210 = scmp.eq.s32.totalorder %s25, 1
      %p211 = por %p209, %p210
      %p212 = scmp.ne.s32.totalorder %s201, %s202
      %p213 = scmp.eq.s32.totalorder %s25, 0
      %p214 = por %p212, %p213
      %p215 = scmp.ne.s32.totalorder %s201, %s202
      %p216 = scmp.eq.s32.totalorder %s26, 1
      %p217 = por %p215, %p216
      %p219 = scmp.ne.s32.totalorder %s202, %s218
      %p220 = scmp.eq.s32.totalorder %s26, 0
      %p221 = por %p219, %p220
      %s222 = ssub.s32 %s28, %s35
      %p223 = scmp.eq.s32.totalorder %s222, 0
      %s225 = sadd.s32 %s224, 1
      %s226 = scalar_select %p223, %s224, %s225
      %p229 = pneg %p223
      %p230 = scmp.eq.s32.totalorder %s20, 1
      %p231 = por %p229, %p230
      %p232 = scmp.ne.s32.totalorder %s224, %s227
      %p233 = scmp.eq.s32.totalorder %s20, 0
      %p234 = por %p232, %p233
      %p235 = scmp.ne.s32.totalorder %s224, %s227
      %p236 = scmp.eq.s32.totalorder %s25, 1
      %p237 = por %p235, %p236
      %p238 = scmp.ne.s32.totalorder %s227, %s228
      %p239 = scmp.eq.s32.totalorder %s25, 0
      %p240 = por %p238, %p239
      %p241 = scmp.ne.s32.totalorder %s227, %s228
      %p242 = scmp.eq.s32.totalorder %s26, 1
      %p243 = por %p241, %p242
      %p245 = scmp.ne.s32.totalorder %s228, %s244
      %p246 = scmp.eq.s32.totalorder %s26, 0
      %p247 = por %p245, %p246
      %s248 = ssub.s32 %s28, %s35
      %p249 = scmp.eq.s32.totalorder %s248, 0
      %s251 = sadd.s32 %s250, 1
      %s252 = scalar_select %p249, %s250, %s251
      %p255 = pneg %p249
      %p256 = scmp.eq.s32.totalorder %s20, 1
      %p257 = por %p255, %p256
      %p258 = scmp.ne.s32.totalorder %s250, %s253
      %p259 = scmp.eq.s32.totalorder %s20, 0
      %p260 = por %p258, %p259
      %p261 = scmp.ne.s32.totalorder %s250, %s253
      %p262 = scmp.eq.s32.totalorder %s25, 1
      %p263 = por %p261, %p262
      %p264 = scmp.ne.s32.totalorder %s253, %s254
      %p265 = scmp.eq.s32.totalorder %s25, 0
      %p266 = por %p264, %p265
      %p267 = scmp.ne.s32.totalorder %s253, %s254
      %p268 = scmp.eq.s32.totalorder %s26, 1
      %p269 = por %p267, %p268
      %p271 = scmp.ne.s32.totalorder %s254, %s270
      %p272 = scmp.eq.s32.totalorder %s26, 0
      %p273 = por %p271, %p272
      %s274 = ssub.s32 %s28, %s35
      %p275 = scmp.eq.s32.totalorder %s274, 0
      %s277 = sadd.s32 %s276, 1
      %s278 = scalar_select %p275, %s276, %s277
      %p281 = pneg %p275
      %p282 = scmp.eq.s32.totalorder %s20, 1
      %p283 = por %p281, %p282
      %p284 = scmp.ne.s32.totalorder %s276, %s279
      %p285 = scmp.eq.s32.totalorder %s20, 0
      %p286 = por %p284, %p285
      %p287 = scmp.ne.s32.totalorder %s276, %s279
      %p288 = scmp.eq.s32.totalorder %s25, 1
      %p289 = por %p287, %p288
      %p290 = scmp.ne.s32.totalorder %s279, %s280
      %p291 = scmp.eq.s32.totalorder %s25, 0
      %p292 = por %p290, %p291
      %p293 = scmp.ne.s32.totalorder %s279, %s280
      %p294 = scmp.eq.s32.totalorder %s26, 1
      %p295 = por %p293, %p294
      %p297 = scmp.ne.s32.totalorder %s280, %s296
      %p298 = scmp.eq.s32.totalorder %s26, 0
      %p299 = por %p297, %p298
      %s300 = ssub.s32 %s28, %s35
      %p301 = scmp.eq.s32.totalorder %s300, 0
      %s303 = sadd.s32 %s302, 1
      %s304 = scalar_select %p301, %s302, %s303
      %p307 = pneg %p301
      %p308 = scmp.eq.s32.totalorder %s20, 1
      %p309 = por %p307, %p308
      %p310 = scmp.ne.s32.totalorder %s302, %s305
      %p311 = scmp.eq.s32.totalorder %s20, 0
      %p312 = por %p310, %p311
      %p313 = scmp.ne.s32.totalorder %s302, %s305
      %p314 = scmp.eq.s32.totalorder %s25, 1
      %p315 = por %p313, %p314
      %p316 = scmp.ne.s32.totalorder %s305, %s306
      %p317 = scmp.eq.s32.totalorder %s25, 0
      %p318 = por %p316, %p317
      %p319 = scmp.ne.s32.totalorder %s305, %s306
      %p320 = scmp.eq.s32.totalorder %s26, 1
      %p321 = por %p319, %p320
      %p323 = scmp.ne.s32.totalorder %s306, %s322
      %p324 = scmp.eq.s32.totalorder %s26, 0
      %p325 = por %p323, %p324
      %s326 = ssub.s32 %s28, %s35
      %p327 = scmp.eq.s32.totalorder %s326, 0
      %s329 = sadd.s32 %s328, 1
      %s330 = scalar_select %p327, %s328, %s329
      %p333 = pneg %p327
      %p334 = scmp.eq.s32.totalorder %s20, 1
      %p335 = por %p333, %p334
      %p336 = scmp.ne.s32.totalorder %s328, %s331
      %p337 = scmp.eq.s32.totalorder %s20, 0
      %p338 = por %p336, %p337
      %p339 = scmp.ne.s32.totalorder %s328, %s331
      %p340 = scmp.eq.s32.totalorder %s25, 1
      %p341 = por %p339, %p340
      %p342 = scmp.ne.s32.totalorder %s331, %s332
      %p343 = scmp.eq.s32.totalorder %s25, 0
      %p344 = por %p342, %p343
      %p345 = scmp.ne.s32.totalorder %s331, %s332
      %p346 = scmp.eq.s32.totalorder %s26, 1
      %p347 = por %p345, %p346
      %p349 = scmp.ne.s32.totalorder %s332, %s348
      %p350 = scmp.eq.s32.totalorder %s26, 0
      %p351 = por %p349, %p350
      %s352 = ssub.s32 %s28, %s35
      %p353 = scmp.eq.s32.totalorder %s352, 0
      %s355 = sadd.s32 %s354, 1
      %s356 = scalar_select %p353, %s354, %s355
      %p359 = pneg %p353
      %p360 = scmp.eq.s32.totalorder %s20, 1
      %p361 = por %p359, %p360
      %p362 = scmp.ne.s32.totalorder %s354, %s357
      %p363 = scmp.eq.s32.totalorder %s20, 0
      %p364 = por %p362, %p363
      %p365 = scmp.ne.s32.totalorder %s354, %s357
      %p366 = scmp.eq.s32.totalorder %s25, 1
      %p367 = por %p365, %p366
      %p368 = scmp.ne.s32.totalorder %s357, %s358
      %p369 = scmp.eq.s32.totalorder %s25, 0
      %p370 = por %p368, %p369
      %p371 = scmp.ne.s32.totalorder %s357, %s358
      %p372 = scmp.eq.s32.totalorder %s26, 1
      %p373 = por %p371, %p372
      %p375 = scmp.ne.s32.totalorder %s358, %s374
      %p376 = scmp.eq.s32.totalorder %s26, 0
      %p377 = por %p375, %p376
      %s378 = ssub.s32 %s27, %s39
      %p379 = scmp.eq.s32.totalorder %s378, 0
      %s381 = sadd.s32 %s380, 1
      %s382 = scalar_select %p379, %s380, %s381
      %p385 = pneg %p379
      %p386 = scmp.eq.s32.totalorder %s20, 1
      %p387 = por %p385, %p386
      %p388 = scmp.ne.s32.totalorder %s380, %s383
      %p389 = scmp.eq.s32.totalorder %s20, 0
      %p390 = por %p388, %p389
      %p391 = scmp.ne.s32.totalorder %s380, %s383
      %p392 = scmp.eq.s32.totalorder %s25, 1
      %p393 = por %p391, %p392
      %p394 = scmp.ne.s32.totalorder %s383, %s384
      %p395 = scmp.eq.s32.totalorder %s25, 0
      %p396 = por %p394, %p395
      %p397 = scmp.ne.s32.totalorder %s383, %s384
      %p398 = scmp.eq.s32.totalorder %s26, 1
      %p399 = por %p397, %p398
      %p401 = scmp.ne.s32.totalorder %s384, %s400
      %p402 = scmp.eq.s32.totalorder %s26, 0
      %p403 = por %p401, %p402
      %p404 = scmp.le.s32.totalorder 1, %s20
      %p405 = scmp.lt.s32.totalorder %s20, 3
      %p406 = pnand %p404, %p405
      %p407 = pneg %p406
      // Predicated region
      $region9: #{tpu_custom_call.1} parent=5 // pred_check
        _
      $region10: #{tpu_custom_call.1} parent=5 // pred_check_branch
        %409 = sbr.rel (%p406) target = $region12
      $region11: #{tpu_custom_call.1} parent=5 // pred_region
        %s410 = ssub.s32 %s20, 1
        // Predicated region
        $region13: #{tpu_custom_call.1} parent=11 // pred_check
          %p411 = pneg %p58
        $region14: #{tpu_custom_call.1} parent=11 // pred_check_branch
          %413 = sbr.rel (%p411) target = $region16
        $region15: #{tpu_custom_call.1} parent=11 // pred_region
          %s414 = smul.u32 2, %s29
          %p415 = scmp.lt.s32.totalorder %s414, 1
          %s416 = scalar_select %p415, %s414, 1
          %s417 = smul.addr %s416, 8
          %s418 = scalar_lea.vmem %s0, %s417
          %s419 = smul.u32 2, %s29
        $region16: #{tpu_custom_call.1} parent=11 // pred_fallthru
          _
        // Predicated region
        $region17: #{tpu_custom_call.1} parent=11 // pred_check
          %p420 = pneg %p84
        $region18: #{tpu_custom_call.1} parent=11 // pred_check_branch
          %422 = sbr.rel (%p420) target = $region20
        $region19: #{tpu_custom_call.1} parent=11 // pred_region
          %s423 = smul.u32 2, %s29
          %p424 = scmp.lt.s32.totalorder %s423, 1
          %s425 = scalar_select %p424, %s423, 1
          %s426 = scalar_lea.vmem %s1, %s425
          %s427 = smul.u32 2, %s29
        $region20: #{tpu_custom_call.1} parent=11 // pred_fallthru
          _
      $region12: #{tpu_custom_call.1} parent=5 // pred_fallthru
        _
      %p428 = scmp.lt.s32.totalorder %s20, 2
      // Predicated region
      $region21: #{tpu_custom_call.1} parent=5 // pred_check
        %p429 = pneg %p428
      $region22: #{tpu_custom_call.1} parent=5 // pred_check_branch
        %431 = sbr.rel (%p429) target = $region24
      $region23: #{tpu_custom_call.1} parent=5 // pred_region
        // Predicated region
        $region25: #{tpu_custom_call.1} parent=23 // pred_check
          %p432 = pneg %p104
        $region26: #{tpu_custom_call.1} parent=23 // pred_check_branch
          %434 = sbr.rel (%p432) target = $region28
        $region27: #{tpu_custom_call.1} parent=23 // pred_region
          %p435 = scmp.lt.s32.totalorder %s28, 1
          %s436 = scalar_select %p435, %s28, 1
          %s437 = smul.addr %s436, 4
          %s438 = smul.addr %s437, 4
          %s439 = scalar_lea.vmem %s2, %s438
        $region28: #{tpu_custom_call.1} parent=23 // pred_fallthru
          _
        // Predicated region
        $region29: #{tpu_custom_call.1} parent=23 // pred_check
          %p440 = pneg %p130
        $region30: #{tpu_custom_call.1} parent=23 // pred_check_branch
          %442 = sbr.rel (%p440) target = $region32
        $region31: #{tpu_custom_call.1} parent=23 // pred_region
          %p443 = scmp.lt.s32.totalorder %s28, 1
          %s444 = scalar_select %p443, %s28, 1
          %s445 = smul.addr %s444, 4
          %s446 = smul.addr %s445, 4
          %s447 = scalar_lea.vmem %s3, %s446
        $region32: #{tpu_custom_call.1} parent=23 // pred_fallthru
          _
        // Predicated region
        $region33: #{tpu_custom_call.1} parent=23 // pred_check
          %p448 = pneg %p156
        $region34: #{tpu_custom_call.1} parent=23 // pred_check_branch
          %450 = sbr.rel (%p448) target = $region36
        $region35: #{tpu_custom_call.1} parent=23 // pred_region
          %p451 = scmp.lt.s32.totalorder %s28, 1
          %s452 = scalar_select %p451, %s28, 1
          %s453 = scalar_lea.vmem %s4, %s452
        $region36: #{tpu_custom_call.1} parent=23 // pred_fallthru
          _
        // Predicated region
        $region37: #{tpu_custom_call.1} parent=23 // pred_check
          %p454 = pneg %p182
        $region38: #{tpu_custom_call.1} parent=23 // pred_check_branch
          %456 = sbr.rel (%p454) target = $region40
        $region39: #{tpu_custom_call.1} parent=23 // pred_region
          %p457 = scmp.lt.s32.totalorder %s28, 1
          %s458 = scalar_select %p457, %s28, 1
          %s459 = scalar_lea.vmem %s5, %s458
        $region40: #{tpu_custom_call.1} parent=23 // pred_fallthru
          _
        // Predicated region
        $region41: #{tpu_custom_call.1} parent=23 // pred_check
          %p460 = pneg %p208
        $region42: #{tpu_custom_call.1} parent=23 // pred_check_branch
          %462 = sbr.rel (%p460) target = $region44
        $region43: #{tpu_custom_call.1} parent=23 // pred_region
          %p463 = scmp.lt.s32.totalorder %s28, 1
          %s464 = scalar_select %p463, %s28, 1
          %s465 = scalar_lea.vmem %s6, %s464
        $region44: #{tpu_custom_call.1} parent=23 // pred_fallthru
          _
        // Predicated region
        $region45: #{tpu_custom_call.1} parent=23 // pred_check
          %p466 = pneg %p234
        $region46: #{tpu_custom_call.1} parent=23 // pred_check_branch
          %468 = sbr.rel (%p466) target = $region48
        $region47: #{tpu_custom_call.1} parent=23 // pred_region
          %p469 = scmp.lt.s32.totalorder %s28, 1
          %s470 = scalar_select %p469, %s28, 1
          %s471 = smul.addr %s470, 4
          %s472 = smul.addr %s471, 4
          %s473 = scalar_lea.vmem %s7, %s472
        $region48: #{tpu_custom_call.1} parent=23 // pred_fallthru
          _
        // Predicated region
        $region49: #{tpu_custom_call.1} parent=23 // pred_check
          %p474 = pneg %p260
        $region50: #{tpu_custom_call.1} parent=23 // pred_check_branch
          %476 = sbr.rel (%p474) target = $region52
        $region51: #{tpu_custom_call.1} parent=23 // pred_region
          %p477 = scmp.lt.s32.totalorder %s28, 1
          %s478 = scalar_select %p477, %s28, 1
          %s479 = scalar_lea.vmem %s8, %s478
        $region52: #{tpu_custom_call.1} parent=23 // pred_fallthru
          _
        // Predicated region
        $region53: #{tpu_custom_call.1} parent=23 // pred_check
          %p480 = pneg %p286
        $region54: #{tpu_custom_call.1} parent=23 // pred_check_branch
          %482 = sbr.rel (%p480) target = $region56
        $region55: #{tpu_custom_call.1} parent=23 // pred_region
          %p483 = scmp.lt.s32.totalorder %s28, 1
          %s484 = scalar_select %p483, %s28, 1
          %s485 = smul.addr %s484, 16
          %s486 = smul.addr %s485, 4
          %s487 = scalar_lea.vmem %s9, %s486
        $region56: #{tpu_custom_call.1} parent=23 // pred_fallthru
          _
        // Predicated region
        $region57: #{tpu_custom_call.1} parent=23 // pred_check
          %p488 = pneg %p312
        $region58: #{tpu_custom_call.1} parent=23 // pred_check_branch
          %490 = sbr.rel (%p488) target = $region60
        $region59: #{tpu_custom_call.1} parent=23 // pred_region
          %p491 = scmp.lt.s32.totalorder %s28, 1
          %s492 = scalar_select %p491, %s28, 1
          %s493 = scalar_lea.vmem %s10, %s492
        $region60: #{tpu_custom_call.1} parent=23 // pred_fallthru
          _
        // Predicated region
        $region61: #{tpu_custom_call.1} parent=23 // pred_check
          %p494 = pneg %p338
        $region62: #{tpu_custom_call.1} parent=23 // pred_check_branch
          %496 = sbr.rel (%p494) target = $region64
        $region63: #{tpu_custom_call.1} parent=23 // pred_region
          %p497 = scmp.lt.s32.totalorder %s28, 1
          %s498 = scalar_select %p497, %s28, 1
          %s499 = scalar_lea.vmem %s11, %s498
        $region64: #{tpu_custom_call.1} parent=23 // pred_fallthru
          _
        // Predicated region
        $region65: #{tpu_custom_call.1} parent=23 // pred_check
          %p500 = pneg %p364
        $region66: #{tpu_custom_call.1} parent=23 // pred_check_branch
          %502 = sbr.rel (%p500) target = $region68
        $region67: #{tpu_custom_call.1} parent=23 // pred_region
          %p503 = scmp.lt.s32.totalorder %s28, 1
          %s504 = scalar_select %p503, %s28, 1
          %s505 = scalar_lea.vmem %s12, %s504
        $region68: #{tpu_custom_call.1} parent=23 // pred_fallthru
          _
      $region24: #{tpu_custom_call.1} parent=5 // pred_fallthru
        _
      %p506 = scmp.le.s32.totalorder 1, %s20
      %p507 = scmp.lt.s32.totalorder %s20, 3
      %p508 = pnand %p506, %p507
      %p509 = pneg %p508
      // Predicated region
      $region69: #{tpu_custom_call.1} parent=5 // pred_check
        _
      $region70: #{tpu_custom_call.1} parent=5 // pred_check_branch
        %511 = sbr.rel (%p508) target = $region72
      $region71: #{tpu_custom_call.1} parent=5 // pred_region
        %s512 = ssub.s32 %s20, 1
        %s513 = smul.u32 2, %s29
        %p514 = scmp.lt.s32.totalorder %s513, 1
        %s515 = scalar_select %p514, %s513, 1
        %s516 = smul.addr %s515, 8
        %s517 = scalar_lea.vmem %s0, %s516
        %p518 = pneg %p58
        %p519 = pneg %p55
        %s520 = smul.u32 2, %s29
        %p521 = scmp.lt.s32.totalorder %s520, 1
        %s522 = scalar_select %p521, %s520, 1
        %s523 = scalar_lea.vmem %s1, %s522
        %p524 = pneg %p84
        %p525 = pneg %p81
        %p526 = scmp.lt.s32.totalorder %s30, 1
        %s527 = scalar_select %p526, %s30, 1
        %s528 = smul.addr %s527, 4
        %s529 = smul.addr %s528, 4
        %s530 = scalar_lea.vmem %s2, %s529
        %p531 = pneg %p110
        %p532 = pneg %p107
        %p533 = scmp.lt.s32.totalorder %s30, 1
        %s534 = scalar_select %p533, %s30, 1
        %s535 = smul.addr %s534, 4
        %s536 = smul.addr %s535, 4
        %s537 = scalar_lea.vmem %s3, %s536
        %p538 = pneg %p136
        %p539 = pneg %p133
        %p540 = scmp.lt.s32.totalorder %s30, 1
        %s541 = scalar_select %p540, %s30, 1
        %s542 = scalar_lea.vmem %s4, %s541
        %p543 = pneg %p162
        %p544 = pneg %p159
        %p545 = scmp.lt.s32.totalorder %s30, 1
        %s546 = scalar_select %p545, %s30, 1
        %s547 = scalar_lea.vmem %s5, %s546
        %p548 = pneg %p188
        %p549 = pneg %p185
        %p550 = scmp.lt.s32.totalorder %s30, 1
        %s551 = scalar_select %p550, %s30, 1
        %s552 = scalar_lea.vmem %s6, %s551
        %p553 = pneg %p214
        %p554 = pneg %p211
        %p555 = scmp.lt.s32.totalorder %s30, 1
        %s556 = scalar_select %p555, %s30, 1
        %s557 = smul.addr %s556, 4
        %s558 = smul.addr %s557, 4
        %s559 = scalar_lea.vmem %s7, %s558
        %p560 = pneg %p240
        %p561 = pneg %p237
        %p562 = scmp.lt.s32.totalorder %s30, 1
        %s563 = scalar_select %p562, %s30, 1
        %s564 = scalar_lea.vmem %s8, %s563
        %p565 = pneg %p266
        %p566 = pneg %p263
        %p567 = scmp.lt.s32.totalorder %s30, 1
        %s568 = scalar_select %p567, %s30, 1
        %s569 = smul.addr %s568, 16
        %s570 = smul.addr %s569, 4
        %s571 = scalar_lea.vmem %s9, %s570
        %p572 = pneg %p292
        %p573 = pneg %p289
        %p574 = scmp.lt.s32.totalorder %s30, 1
        %s575 = scalar_select %p574, %s30, 1
        %s576 = scalar_lea.vmem %s10, %s575
        %p577 = pneg %p318
        %p578 = pneg %p315
        %p579 = scmp.lt.s32.totalorder %s30, 1
        %s580 = scalar_select %p579, %s30, 1
        %s581 = scalar_lea.vmem %s11, %s580
        %p582 = pneg %p344
        %p583 = pneg %p341
        %p584 = scmp.lt.s32.totalorder %s30, 1
        %s585 = scalar_select %p584, %s30, 1
        %s586 = scalar_lea.vmem %s12, %s585
        %p587 = pneg %p370
        %p588 = pneg %p367
        %p589 = pneg %p396
        %p590 = pneg %p393
        %s591 = smul.u32 2, %s29
        %p592 = scmp.lt.s32.totalorder %s591, 1
        %s593 = scalar_select %p592, %s591, 1
        %s594 = smul.addr %s593, 8
        %s595 = scalar_lea.vmem %s0, %s594
        %s596 = smul.u32 2, %s29
        %s597 = smul.u32 2, %s29
        %p598 = scmp.lt.s32.totalorder %s597, 1
        %s599 = scalar_select %p598, %s597, 1
        %s600 = scalar_lea.vmem %s1, %s599
        %s601 = smul.u32 2, %s29
        %p602 = scmp.lt.s32.totalorder %s30, 1
        %s603 = scalar_select %p602, %s30, 1
        %s604 = smul.addr %s603, 4
        %s605 = smul.addr %s604, 4
        %s606 = scalar_lea.vmem %s2, %s605
        %p607 = scmp.lt.s32.totalorder %s30, 1
        %s608 = scalar_select %p607, %s30, 1
        %s609 = smul.addr %s608, 4
        %s610 = smul.addr %s609, 4
        %s611 = scalar_lea.vmem %s3, %s610
        %p612 = scmp.lt.s32.totalorder %s30, 1
        %s613 = scalar_select %p612, %s30, 1
        %s614 = scalar_lea.vmem %s4, %s613
        %p615 = scmp.lt.s32.totalorder %s30, 1
        %s616 = scalar_select %p615, %s30, 1
        %s617 = scalar_lea.vmem %s5, %s616
        %p618 = scmp.lt.s32.totalorder %s30, 1
        %s619 = scalar_select %p618, %s30, 1
        %s620 = scalar_lea.vmem %s6, %s619
        %p621 = scmp.lt.s32.totalorder %s30, 1
        %s622 = scalar_select %p621, %s30, 1
        %s623 = smul.addr %s622, 4
        %s624 = smul.addr %s623, 4
        %s625 = scalar_lea.vmem %s7, %s624
        %p626 = scmp.lt.s32.totalorder %s30, 1
        %s627 = scalar_select %p626, %s30, 1
        %s628 = scalar_lea.vmem %s8, %s627
        %p629 = scmp.lt.s32.totalorder %s30, 1
        %s630 = scalar_select %p629, %s30, 1
        %s631 = smul.addr %s630, 16
        %s632 = smul.addr %s631, 4
        %s633 = scalar_lea.vmem %s9, %s632
        %p634 = scmp.lt.s32.totalorder %s30, 1
        %s635 = scalar_select %p634, %s30, 1
        %s636 = scalar_lea.vmem %s10, %s635
        %p637 = scmp.lt.s32.totalorder %s30, 1
        %s638 = scalar_select %p637, %s30, 1
        %s639 = scalar_lea.vmem %s11, %s638
        %p640 = scmp.lt.s32.totalorder %s30, 1
        %s641 = scalar_select %p640, %s30, 1
        %s642 = scalar_lea.vmem %s12, %s641
        %s643 = smul.u32 2, %s29
        %p645 = scmp.eq.s32.totalorder %s30, 0
        // Predicated region
        $region73: #{tpu_custom_call.1} parent=71 // pred_check
          %p646 = pneg %p645
        $region74: #{tpu_custom_call.1} parent=71 // pred_check_branch
          %648 = sbr.rel (%p646) target = $region76
        $region75: #{tpu_custom_call.1} parent=71 // pred_region
          %v649 = vld [vmem:[%s595] sm:$0xff]
          %v650 = vld [vmem:[%s595 + $0x8] sm:$0xff]
          %vm651 = vcmask 261120
          %652 = vst.msk [vmem:[#allocation3] sm:$0xff] %vm651, %v649
          %653 = vst.msk [vmem:[#allocation3 + $0x8] sm:$0xff] %vm651, %v650
        $region76: #{tpu_custom_call.1} parent=71 // pred_fallthru
          _
        %v654 = vld [vmem:[#allocation3] sm:$0xff]
        %v655 = vld [vmem:[#allocation3 + $0x8] sm:$0xff]
        %v656 = vpack.c.bf16 %v655, %v654
        %v657 = vld [vmem:[%s606] sm:$0xf]
        %v658 = vld [vmem:[%s606 + $0x4] sm:$0xf]
        %v659 = vld [vmem:[%s606 + $0x8] sm:$0xf]
        %v660 = vld [vmem:[%s606 + $0xc] sm:$0xf]
        %v665 = vunpack.c.l.b16 %v657
        %v666 = vunpack.c.l.b16 %v658
        %v667 = vunpack.c.l.b16 %v659
        %v668 = vunpack.c.l.b16 %v660
        %v669 = vpack.c.b16 %v666, %v665
        %v670 = vpack.c.b16 %v668, %v667
        %vm673 = vcmask 261120
        %v675 = vsel %vm673, %v656, 0
        %677 = vmatprep.subr.bf16.mxu0 0
        %678 = vmatpush1.bf16.msra.mxu0 %v669
        %679 = vmatprep.subr.bf16.mxu0 0
        %680 = vmatpush1.bf16.msra.mxu0 %v670
        %681 = vmatprep.subr.bf16.mxu0 0
        %682 = vmatpush1.bf16.msra.mxu0 0
        %683 = vmatprep.subr.bf16.mxu0 0
        %684 = vmatpush1.bf16.msra.mxu0 0
        %685 = vmatprep.subr.bf16.mxu0 0
        %686 = vmatpush1.bf16.msra.mxu0 0
        %687 = vmatprep.subr.bf16.mxu0 0
        %688 = vmatpush1.bf16.msra.mxu0 0
        %689 = vmatprep.subr.bf16.mxu0 0
        %690 = vmatpush1.bf16.msra.mxu0 0
        %691 = vmatprep.subr.bf16.mxu0 0
        %692 = vmatpush1.bf16.msra.mxu0 0
        %693 = vmatprep.subr.bf16.mxu0 0
        %694 = vmatpush1.bf16.msra.mxu0 0
        %695 = vmatprep.subr.bf16.mxu0 0
        %696 = vmatpush1.bf16.msra.mxu0 0
        %697 = vmatprep.subr.bf16.mxu0 0
        %698 = vmatpush1.bf16.msra.mxu0 0
        %699 = vmatprep.subr.bf16.mxu0 0
        %700 = vmatpush1.bf16.msra.mxu0 0
        %701 = vmatprep.subr.bf16.mxu0 0
        %702 = vmatpush1.bf16.msra.mxu0 0
        %703 = vmatprep.subr.bf16.mxu0 0
        %704 = vmatpush1.bf16.msra.mxu0 0
        %705 = vmatprep.subr.bf16.mxu0 0
        %706 = vmatpush1.bf16.msra.mxu0 0
        %707 = vmatprep.subr.bf16.mxu0 0
        %708 = vmatpush1.bf16.msra.mxu0 0
        %709 = vmatprep.mubr.bf16.mxu0 0
        %710 = vmatmul.mubr.bf16.gmra.mrb[0].mxu0 %v675
        %v711 = vpop.f32.mrb[0].mxu0
        %v712 = vadd.f32 0.0, %v711
        %v713 = vpop.f32.mrb[0].mxu0
        %v714 = vpop.f32.mrb[0].mxu0
        %v715 = vadd.f32 0.0, %v714
        %v716 = vpop.f32.mrb[0].mxu0
        %717 = vdwg.mxu0
        %v718 = vpack.c.bf16 %v715, %v712
        %v720 = vunpack.c.l.b16 %v718
        %v721 = vunpack.c.h.b16 %v718
        %v722 = vpack.c.b16 %v720, %v720
        %v723 = vpack.c.b16 %v721, %v721
        %v724 = vld [vmem:[%s600] sm:$0x1]
        %v725 = vld [vmem:[%s600 + $0x1] sm:$0x1]
        %v726 = vmul.f32 %v724, -1e+09
        %v727 = vmul.f32 %v725, -1e+09
        %v730 = vlaneseq
        %v731 = vshrl.u32 %v730, 7
        %v732 = vsub.s32 0, %v731
        %v733 = vrot.slane %v726, %v732
        %v734 = vlaneseq
        %v735 = vshrl.u32 %v734, 7
        %v736 = vsub.s32 0, %v735
        %v737 = vrot.slane %v727, %v736
        %740 = vrot.lane.b32.xlu0 %v722, 96
        %v741 = vpop.permute.xlu0 %740
        %vm742 = vcmask 64512
        %v744 = vsel %vm742, %v722, 0
        %v747 = vsel %vm742, %v741, 0
        %749 = vmatprep.subr.bf16.mxu0 0
        %750 = vmatpush1.bf16.xpose.msra.mxu0 %v747
        %751 = vmatprep.subr.bf16.mxu0 0
        %752 = vmatpush1.bf16.xpose.msra.mxu0 0
        %753 = vmatprep.subr.bf16.mxu0 0
        %754 = vmatpush1.bf16.xpose.msra.mxu0 0
        %755 = vmatprep.subr.bf16.mxu0 0
        %756 = vmatpush1.bf16.xpose.msra.mxu0 0
        %757 = vmatprep.subr.bf16.mxu0 0
        %758 = vmatpush1.bf16.xpose.msra.mxu0 0
        %759 = vmatprep.subr.bf16.mxu0 0
        %760 = vmatpush1.bf16.xpose.msra.mxu0 0
        %761 = vmatprep.subr.bf16.mxu0 0
        %762 = vmatpush1.bf16.xpose.msra.mxu0 0
        %763 = vmatprep.subr.bf16.mxu0 0
        %764 = vmatpush1.bf16.xpose.msra.mxu0 0
        %765 = vmatprep.subr.bf16.mxu0 0
        %766 = vmatpush1.bf16.xpose.msra.mxu0 0
        %767 = vmatprep.subr.bf16.mxu0 0
        %768 = vmatpush1.bf16.xpose.msra.mxu0 0
        %769 = vmatprep.subr.bf16.mxu0 0
        %770 = vmatpush1.bf16.xpose.msra.mxu0 0
        %771 = vmatprep.subr.bf16.mxu0 0
        %772 = vmatpush1.bf16.xpose.msra.mxu0 0
        %773 = vmatprep.subr.bf16.mxu0 0
        %774 = vmatpush1.bf16.xpose.msra.mxu0 0
        %775 = vmatprep.subr.bf16.mxu0 0
        %776 = vmatpush1.bf16.xpose.msra.mxu0 0
        %777 = vmatprep.subr.bf16.mxu0 0
        %778 = vmatpush1.bf16.xpose.msra.mxu0 0
        %779 = vmatprep.subr.bf16.mxu0 0
        %780 = vmatpush1.bf16.xpose.msra.mxu0 0
        %781 = vmatprep.mubr.bf16.mxu0 0
        %782 = vmatmul.mubr.bf16.gmra.mrb[0].mxu0 %v744
        %v783 = vpop.f32.mrb[0].mxu0
        %v784 = vadd.f32 %v733, %v783
        %v785 = vpop.f32.mrb[0].mxu0
        %v786 = vpop.f32.mrb[0].mxu0
        %v787 = vpop.f32.mrb[0].mxu0
        %788 = vdwg.mxu0
        %789 = vrot.lane.b32.xlu0 %v723, 96
        %v790 = vpop.permute.xlu0 %789
        %v792 = vsel %vm742, %v723, 0
        %v795 = vsel %vm742, %v790, 0
        %797 = vmatprep.subr.bf16.mxu0 0
        %798 = vmatpush1.bf16.xpose.msra.mxu0 %v795
        %799 = vmatprep.subr.bf16.mxu0 0
        %800 = vmatpush1.bf16.xpose.msra.mxu0 0
        %801 = vmatprep.subr.bf16.mxu0 0
        %802 = vmatpush1.bf16.xpose.msra.mxu0 0
        %803 = vmatprep.subr.bf16.mxu0 0
        %804 = vmatpush1.bf16.xpose.msra.mxu0 0
        %805 = vmatprep.subr.bf16.mxu0 0
        %806 = vmatpush1.bf16.xpose.msra.mxu0 0
        %807 = vmatprep.subr.bf16.mxu0 0
        %808 = vmatpush1.bf16.xpose.msra.mxu0 0
        %809 = vmatprep.subr.bf16.mxu0 0
        %810 = vmatpush1.bf16.xpose.msra.mxu0 0
        %811 = vmatprep.subr.bf16.mxu0 0
        %812 = vmatpush1.bf16.xpose.msra.mxu0 0
        %813 = vmatprep.subr.bf16.mxu0 0
        %814 = vmatpush1.bf16.xpose.msra.mxu0 0
        %815 = vmatprep.subr.bf16.mxu0 0
        %816 = vmatpush1.bf16.xpose.msra.mxu0 0
        %817 = vmatprep.subr.bf16.mxu0 0
        %818 = vmatpush1.bf16.xpose.msra.mxu0 0
        %819 = vmatprep.subr.bf16.mxu0 0
        %820 = vmatpush1.bf16.xpose.msra.mxu0 0
        %821 = vmatprep.subr.bf16.mxu0 0
        %822 = vmatpush1.bf16.xpose.msra.mxu0 0
        %823 = vmatprep.subr.bf16.mxu0 0
        %824 = vmatpush1.bf16.xpose.msra.mxu0 0
        %825 = vmatprep.subr.bf16.mxu0 0
        %826 = vmatpush1.bf16.xpose.msra.mxu0 0
        %827 = vmatprep.subr.bf16.mxu0 0
        %828 = vmatpush1.bf16.xpose.msra.mxu0 0
        %829 = vmatprep.mubr.bf16.mxu0 0
        %830 = vmatmul.mubr.bf16.gmra.mrb[0].mxu0 %v792
        %v831 = vpop.f32.mrb[0].mxu0
        %v832 = vadd.f32 %v737, %v831
        %v833 = vpop.f32.mrb[0].mxu0
        %v834 = vpop.f32.mrb[0].mxu0
        %v835 = vpop.f32.mrb[0].mxu0
        %836 = vdwg.mxu0
        %v837 = vsel %vm742, %v784, -inf
        %838 = vmax.xlane.f32.xlu0 %v837
        %v839 = vpop.xlane.xlu0 %838
        %v840 = vsel %vm742, %v832, -inf
        %841 = vmax.xlane.f32.xlu0 %v840
        %v842 = vpop.xlane.xlu0 %841
        %v843 = vsub.f32 %v784, %v839
        %v844 = vsub.f32 %v832, %v842
        %v845 = vmul.f32 %v843, 1.442695
        %v846 = vpow.pop %v845
        %v847 = vmul.f32 %v844, 1.442695
        %v848 = vpow.pop %v847
        %v849 = vsel %vm742, %v846, 0.0
        %850 = vadd.xlane.f32.xlu0 %v849
        %v851 = vpop.xlane.xlu0 %850
        %v852 = vsel %vm742, %v848, 0.0
        %853 = vadd.xlane.f32.xlu0 %v852
        %v854 = vpop.xlane.xlu0 %853
        %v855 = vrcp.pop %v851
        %v856 = vrcp.pop %v854
        %v857 = vmul.f32 %v846, %v855
        %v858 = vmul.f32 %v848, %v856
        %v859 = vpack.c.bf16 %v857, %v857
        %v860 = vpack.c.bf16 %v858, %v858
        %861 = vrot.lane.b32.xlu0 %v722, 64
        %v862 = vpop.permute.xlu0 %861
        %v864 = vsel %vm742, %v859, 0
        %vm866 = vcmask 1043456
        %v868 = vsel %vm866, %v862, 0
        %870 = vmatprep.subr.bf16.mxu0 0
        %871 = vmatpush1.bf16.msra.mxu0 %v868
        %872 = vmatprep.subr.bf16.mxu0 0
        %873 = vmatpush1.bf16.msra.mxu0 0
        %874 = vmatprep.subr.bf16.mxu0 0
        %875 = vmatpush1.bf16.msra.mxu0 0
        %876 = vmatprep.subr.bf16.mxu0 0
        %877 = vmatpush1.bf16.msra.mxu0 0
        %878 = vmatprep.subr.bf16.mxu0 0
        %879 = vmatpush1.bf16.msra.mxu0 0
        %880 = vmatprep.subr.bf16.mxu0 0
        %881 = vmatpush1.bf16.msra.mxu0 0
        %882 = vmatprep.subr.bf16.mxu0 0
        %883 = vmatpush1.bf16.msra.mxu0 0
        %884 = vmatprep.subr.bf16.mxu0 0
        %885 = vmatpush1.bf16.msra.mxu0 0
        %886 = vmatprep.subr.bf16.mxu0 0
        %887 = vmatpush1.bf16.msra.mxu0 0
        %888 = vmatprep.subr.bf16.mxu0 0
        %889 = vmatpush1.bf16.msra.mxu0 0
        %890 = vmatprep.subr.bf16.mxu0 0
        %891 = vmatpush1.bf16.msra.mxu0 0
        %892 = vmatprep.subr.bf16.mxu0 0
        %893 = vmatpush1.bf16.msra.mxu0 0
        %894 = vmatprep.subr.bf16.mxu0 0
        %895 = vmatpush1.bf16.msra.mxu0 0
        %896 = vmatprep.subr.bf16.mxu0 0
        %897 = vmatpush1.bf16.msra.mxu0 0
        %898 = vmatprep.subr.bf16.mxu0 0
        %899 = vmatpush1.bf16.msra.mxu0 0
        %900 = vmatprep.subr.bf16.mxu0 0
        %901 = vmatpush1.bf16.msra.mxu0 0
        %902 = vmatprep.mubr.bf16.mxu0 0
        %903 = vmatmul.mubr.bf16.gmra.mrb[0].mxu0 %v864
        %v904 = vpop.f32.mrb[0].mxu0
        %v905 = vadd.f32 0.0, %v904
        %v906 = vpop.f32.mrb[0].mxu0
        %v907 = vpop.f32.mrb[0].mxu0
        %v908 = vpop.f32.mrb[0].mxu0
        %909 = vdwg.mxu0
        %910 = vrot.lane.b32.xlu0 %v723, 64
        %v911 = vpop.permute.xlu0 %910
        %v913 = vsel %vm742, %v860, 0
        %v916 = vsel %vm866, %v911, 0
        %918 = vmatprep.subr.bf16.mxu0 0
        %919 = vmatpush1.bf16.msra.mxu0 %v916
        %920 = vmatprep.subr.bf16.mxu0 0
        %921 = vmatpush1.bf16.msra.mxu0 0
        %922 = vmatprep.subr.bf16.mxu0 0
        %923 = vmatpush1.bf16.msra.mxu0 0
        %924 = vmatprep.subr.bf16.mxu0 0
        %925 = vmatpush1.bf16.msra.mxu0 0
        %926 = vmatprep.subr.bf16.mxu0 0
        %927 = vmatpush1.bf16.msra.mxu0 0
        %928 = vmatprep.subr.bf16.mxu0 0
        %929 = vmatpush1.bf16.msra.mxu0 0
        %930 = vmatprep.subr.bf16.mxu0 0
        %931 = vmatpush1.bf16.msra.mxu0 0
        %932 = vmatprep.subr.bf16.mxu0 0
        %933 = vmatpush1.bf16.msra.mxu0 0
        %934 = vmatprep.subr.bf16.mxu0 0
        %935 = vmatpush1.bf16.msra.mxu0 0
        %936 = vmatprep.subr.bf16.mxu0 0
        %937 = vmatpush1.bf16.msra.mxu0 0
        %938 = vmatprep.subr.bf16.mxu0 0
        %939 = vmatpush1.bf16.msra.mxu0 0
        %940 = vmatprep.subr.bf16.mxu0 0
        %941 = vmatpush1.bf16.msra.mxu0 0
        %942 = vmatprep.subr.bf16.mxu0 0
        %943 = vmatpush1.bf16.msra.mxu0 0
        %944 = vmatprep.subr.bf16.mxu0 0
        %945 = vmatpush1.bf16.msra.mxu0 0
        %946 = vmatprep.subr.bf16.mxu0 0
        %947 = vmatpush1.bf16.msra.mxu0 0
        %948 = vmatprep.subr.bf16.mxu0 0
        %949 = vmatpush1.bf16.msra.mxu0 0
        %950 = vmatprep.mubr.bf16.mxu0 0
        %951 = vmatmul.mubr.bf16.gmra.mrb[0].mxu0 %v913
        %v952 = vpop.f32.mrb[0].mxu0
        %v953 = vadd.f32 0.0, %v952
        %v954 = vpop.f32.mrb[0].mxu0
        %v955 = vpop.f32.mrb[0].mxu0
        %v956 = vpop.f32.mrb[0].mxu0
        %957 = vdwg.mxu0
        %958 = vst.msk [vmem:[#allocation2] sm:$0xff] %vm742, %v905
        %959 = vst.msk [vmem:[#allocation2 + $0x8] sm:$0xff] %vm742, %v953
        %960 = vrot.lane.b32.xlu0 %v722, 120
        %v961 = vpop.permute.xlu0 %960
        %962 = vrot.lane.b32.xlu0 %v722, 88
        %v963 = vpop.permute.xlu0 %962
        %v965 = vsel %vm742, %v961, 0
        %v968 = vsel %vm742, %v963, 0
        %970 = vmatprep.subr.bf16.mxu0 0
        %971 = vmatpush1.bf16.xpose.msra.mxu0 %v968
        %972 = vmatprep.subr.bf16.mxu0 0
        %973 = vmatpush1.bf16.xpose.msra.mxu0 0
        %974 = vmatprep.subr.bf16.mxu0 0
        %975 = vmatpush1.bf16.xpose.msra.mxu0 0
        %976 = vmatprep.subr.bf16.mxu0 0
        %977 = vmatpush1.bf16.xpose.msra.mxu0 0
        %978 = vmatprep.subr.bf16.mxu0 0
        %979 = vmatpush1.bf16.xpose.msra.mxu0 0
        %980 = vmatprep.subr.bf16.mxu0 0
        %981 = vmatpush1.bf16.xpose.msra.mxu0 0
        %982 = vmatprep.subr.bf16.mxu0 0
        %983 = vmatpush1.bf16.xpose.msra.mxu0 0
        %984 = vmatprep.subr.bf16.mxu0 0
        %985 = vmatpush1.bf16.xpose.msra.mxu0 0
        %986 = vmatprep.subr.bf16.mxu0 0
        %987 = vmatpush1.bf16.xpose.msra.mxu0 0
        %988 = vmatprep.subr.bf16.mxu0 0
        %989 = vmatpush1.bf16.xpose.msra.mxu0 0
        %990 = vmatprep.subr.bf16.mxu0 0
        %991 = vmatpush1.bf16.xpose.msra.mxu0 0
        %992 = vmatprep.subr.bf16.mxu0 0
        %993 = vmatpush1.bf16.xpose.msra.mxu0 0
        %994 = vmatprep.subr.bf16.mxu0 0
        %995 = vmatpush1.bf16.xpose.msra.mxu0 0
        %996 = vmatprep.subr.bf16.mxu0 0
        %997 = vmatpush1.bf16.xpose.msra.mxu0 0
        %998 = vmatprep.subr.bf16.mxu0 0
        %999 = vmatpush1.bf16.xpose.msra.mxu0 0
        %1000 = vmatprep.subr.bf16.mxu0 0
        %1001 = vmatpush1.bf16.xpose.msra.mxu0 0
        %1002 = vmatprep.mubr.bf16.mxu0 0
        %1003 = vmatmul.mubr.bf16.gmra.mrb[0].mxu0 %v965
        %v1004 = vpop.f32.mrb[0].mxu0
        %v1005 = vadd.f32 %v733, %v1004
        %v1006 = vpop.f32.mrb[0].mxu0
        %v1007 = vpop.f32.mrb[0].mxu0
        %v1008 = vpop.f32.mrb[0].mxu0
        %1009 = vdwg.mxu0
        %1010 = vrot.lane.b32.xlu0 %v723, 120
        %v1011 = vpop.permute.xlu0 %1010
        %1012 = vrot.lane.b32.xlu0 %v723, 88
        %v1013 = vpop.permute.xlu0 %1012
        %v1015 = vsel %vm742, %v1011, 0
        %v1018 = vsel %vm742, %v1013, 0
        %1020 = vmatprep.subr.bf16.mxu0 0
        %1021 = vmatpush1.bf16.xpose.msra.mxu0 %v1018
        %1022 = vmatprep.subr.bf16.mxu0 0
        %1023 = vmatpush1.bf16.xpose.msra.mxu0 0
        %1024 = vmatprep.subr.bf16.mxu0 0
        %1025 = vmatpush1.bf16.xpose.msra.mxu0 0
        %1026 = vmatprep.subr.bf16.mxu0 0
        %1027 = vmatpush1.bf16.xpose.msra.mxu0 0
        %1028 = vmatprep.subr.bf16.mxu0 0
        %1029 = vmatpush1.bf16.xpose.msra.mxu0 0
        %1030 = vmatprep.subr.bf16.mxu0 0
        %1031 = vmatpush1.bf16.xpose.msra.mxu0 0
        %1032 = vmatprep.subr.bf16.mxu0 0
        %1033 = vmatpush1.bf16.xpose.msra.mxu0 0
        %1034 = vmatprep.subr.bf16.mxu0 0
        %1035 = vmatpush1.bf16.xpose.msra.mxu0 0
        %1036 = vmatprep.subr.bf16.mxu0 0
        %1037 = vmatpush1.bf16.xpose.msra.mxu0 0
        %1038 = vmatprep.subr.bf16.mxu0 0
        %1039 = vmatpush1.bf16.xpose.msra.mxu0 0
        %1040 = vmatprep.subr.bf16.mxu0 0
        %1041 = vmatpush1.bf16.xpose.msra.mxu0 0
        %1042 = vmatprep.subr.bf16.mxu0 0
        %1043 = vmatpush1.bf16.xpose.msra.mxu0 0
        %1044 = vmatprep.subr.bf16.mxu0 0
        %1045 = vmatpush1.bf16.xpose.msra.mxu0 0
        %1046 = vmatprep.subr.bf16.mxu0 0
        %1047 = vmatpush1.bf16.xpose.msra.mxu0 0
        %1048 = vmatprep.subr.bf16.mxu0 0
        %1049 = vmatpush1.bf16.xpose.msra.mxu0 0
        %1050 = vmatprep.subr.bf16.mxu0 0
        %1051 = vmatpush1.bf16.xpose.msra.mxu0 0
        %1052 = vmatprep.mubr.bf16.mxu0 0
        %1053 = vmatmul.mubr.bf16.gmra.mrb[0].mxu0 %v1015
        %v1054 = vpop.f32.mrb[0].mxu0
        %v1055 = vadd.f32 %v737, %v1054
        %v1056 = vpop.f32.mrb[0].mxu0
        %v1057 = vpop.f32.mrb[0].mxu0
        %v1058 = vpop.f32.mrb[0].mxu0
        %1059 = vdwg.mxu0
        %v1060 = vsel %vm742, %v1005, -inf
        %1061 = vmax.xlane.f32.xlu0 %v1060
        %v1062 = vpop.xlane.xlu0 %1061
        %v1063 = vsel %vm742, %v1055, -inf
        %1064 = vmax.xlane.f32.xlu0 %v1063
        %v1065 = vpop.xlane.xlu0 %1064
        %v1066 = vsub.f32 %v1005, %v1062
        %v1067 = vsub.f32 %v1055, %v1065
        %v1068 = vmul.f32 %v1066, 1.442695
        %v1069 = vpow.pop %v1068
        %v1070 = vmul.f32 %v1067, 1.442695
        %v1071 = vpow.pop %v1070
        %v1072 = vsel %vm742, %v1069, 0.0
        %1073 = vadd.xlane.f32.xlu0 %v1072
        %v1074 = vpop.xlane.xlu0 %1073
        %v1075 = vsel %vm742, %v1071, 0.0
        %1076 = vadd.xlane.f32.xlu0 %v1075
        %v1077 = vpop.xlane.xlu0 %1076
        %v1078 = vrcp.pop %v1074
        %v1079 = vrcp.pop %v1077
        %v1080 = vmul.f32 %v1069, %v1078
        %v1081 = vmul.f32 %v1071, %v1079
        %v1082 = vpack.c.bf16 %v1080, %v1080
        %v1083 = vpack.c.bf16 %v1081, %v1081
        %1084 = vrot.lane.b32.xlu0 %v722, 56
        %v1085 = vpop.permute.xlu0 %1084
        %v1087 = vsel %vm742, %v1082, 0
        %v1090 = vsel %vm866, %v1085, 0
        %1092 = vmatprep.subr.bf16.mxu0 0
        %1093 = vmatpush1.bf16.msra.mxu0 %v1090
        %1094 = vmatprep.subr.bf16.mxu0 0
        %1095 = vmatpush1.bf16.msra.mxu0 0
        %1096 = vmatprep.subr.bf16.mxu0 0
        %1097 = vmatpush1.bf16.msra.mxu0 0
        %1098 = vmatprep.subr.bf16.mxu0 0
        %1099 = vmatpush1.bf16.msra.mxu0 0
        %1100 = vmatprep.subr.bf16.mxu0 0
        %1101 = vmatpush1.bf16.msra.mxu0 0
        %1102 = vmatprep.subr.bf16.mxu0 0
        %1103 = vmatpush1.bf16.msra.mxu0 0
        %1104 = vmatprep.subr.bf16.mxu0 0
        %1105 = vmatpush1.bf16.msra.mxu0 0
        %1106 = vmatprep.subr.bf16.mxu0 0
        %1107 = vmatpush1.bf16.msra.mxu0 0
        %1108 = vmatprep.subr.bf16.mxu0 0
        %1109 = vmatpush1.bf16.msra.mxu0 0
        %1110 = vmatprep.subr.bf16.mxu0 0
        %1111 = vmatpush1.bf16.msra.mxu0 0
        %1112 = vmatprep.subr.bf16.mxu0 0
        %1113 = vmatpush1.bf16.msra.mxu0 0
        %1114 = vmatprep.subr.bf16.mxu0 0
        %1115 = vmatpush1.bf16.msra.mxu0 0
        %1116 = vmatprep.subr.bf16.mxu0 0
        %1117 = vmatpush1.bf16.msra.mxu0 0
        %1118 = vmatprep.subr.bf16.mxu0 0
        %1119 = vmatpush1.bf16.msra.mxu0 0
        %1120 = vmatprep.subr.bf16.mxu0 0
        %1121 = vmatpush1.bf16.msra.mxu0 0
        %1122 = vmatprep.subr.bf16.mxu0 0
        %1123 = vmatpush1.bf16.msra.mxu0 0
        %1124 = vmatprep.mubr.bf16.mxu0 0
        %1125 = vmatmul.mubr.bf16.gmra.mrb[0].mxu0 %v1087
        %v1126 = vpop.f32.mrb[0].mxu0
        %v1127 = vadd.f32 0.0, %v1126
        %v1128 = vpop.f32.mrb[0].mxu0
        %v1129 = vpop.f32.mrb[0].mxu0
        %v1130 = vpop.f32.mrb[0].mxu0
        %1131 = vdwg.mxu0
        %1132 = vrot.lane.b32.xlu0 %v723, 56
        %v1133 = vpop.permute.xlu0 %1132
        %v1135 = vsel %vm742, %v1083, 0
        %v1138 = vsel %vm866, %v1133, 0
        %1140 = vmatprep.subr.bf16.mxu0 0
        %1141 = vmatpush1.bf16.msra.mxu0 %v1138
        %1142 = vmatprep.subr.bf16.mxu0 0
        %1143 = vmatpush1.bf16.msra.mxu0 0
        %1144 = vmatprep.subr.bf16.mxu0 0
        %1145 = vmatpush1.bf16.msra.mxu0 0
        %1146 = vmatprep.subr.bf16.mxu0 0
        %1147 = vmatpush1.bf16.msra.mxu0 0
        %1148 = vmatprep.subr.bf16.mxu0 0
        %1149 = vmatpush1.bf16.msra.mxu0 0
        %1150 = vmatprep.subr.bf16.mxu0 0
        %1151 = vmatpush1.bf16.msra.mxu0 0
        %1152 = vmatprep.subr.bf16.mxu0 0
        %1153 = vmatpush1.bf16.msra.mxu0 0
        %1154 = vmatprep.subr.bf16.mxu0 0
        %1155 = vmatpush1.bf16.msra.mxu0 0
        %1156 = vmatprep.subr.bf16.mxu0 0
        %1157 = vmatpush1.bf16.msra.mxu0 0
        %1158 = vmatprep.subr.bf16.mxu0 0
        %1159 = vmatpush1.bf16.msra.mxu0 0
        %1160 = vmatprep.subr.bf16.mxu0 0
        %1161 = vmatpush1.bf16.msra.mxu0 0
        %1162 = vmatprep.subr.bf16.mxu0 0
        %1163 = vmatpush1.bf16.msra.mxu0 0
        %1164 = vmatprep.subr.bf16.mxu0 0
        %1165 = vmatpush1.bf16.msra.mxu0 0
        %1166 = vmatprep.subr.bf16.mxu0 0
        %1167 = vmatpush1.bf16.msra.mxu0 0
        %1168 = vmatprep.subr.bf16.mxu0 0
        %1169 = vmatpush1.bf16.msra.mxu0 0
        %1170 = vmatprep.subr.bf16.mxu0 0
        %1171 = vmatpush1.bf16.msra.mxu0 0
        %1172 = vmatprep.mubr.bf16.mxu0 0
        %1173 = vmatmul.mubr.bf16.gmra.mrb[0].mxu0 %v1135
        %v1174 = vpop.f32.mrb[0].mxu0
        %v1175 = vadd.f32 0.0, %v1174
        %v1176 = vpop.f32.mrb[0].mxu0
        %v1177 = vpop.f32.mrb[0].mxu0
        %v1178 = vpop.f32.mrb[0].mxu0
        %1179 = vdwg.mxu0
        %1182 = vrot.lane.b32.xlu0 %v1127, 8
        %v1183 = vpop.permute.xlu0 %1182
        %1184 = vrot.lane.b32.xlu0 %v1175, 8
        %v1185 = vpop.permute.xlu0 %1184
        %vm1188 = vcmask 130112
        %1189 = vst.msk [vmem:[#allocation2] sm:$0xff] %vm1188, %v1183
        %1190 = vst.msk [vmem:[#allocation2 + $0x8] sm:$0xff] %vm1188, %v1185
        %1191 = vrot.lane.b32.xlu0 %v722, 112
        %v1192 = vpop.permute.xlu0 %1191
        %1193 = vrot.lane.b32.xlu0 %v722, 80
        %v1194 = vpop.permute.xlu0 %1193
        %v1196 = vsel %vm742, %v1192, 0
        %v1199 = vsel %vm742, %v1194, 0
        %1201 = vmatprep.subr.bf16.mxu0 0
        %1202 = vmatpush1.bf16.xpose.msra.mxu0 %v1199
        %1203 = vmatprep.subr.bf16.mxu0 0
        %1204 = vmatpush1.bf16.xpose.msra.mxu0 0
        %1205 = vmatprep.subr.bf16.mxu0 0
        %1206 = vmatpush1.bf16.xpose.msra.mxu0 0
        %1207 = vmatprep.subr.bf16.mxu0 0
        %1208 = vmatpush1.bf16.xpose.msra.mxu0 0
        %1209 = vmatprep.subr.bf16.mxu0 0
        %1210 = vmatpush1.bf16.xpose.msra.mxu0 0
        %1211 = vmatprep.subr.bf16.mxu0 0
        %1212 = vmatpush1.bf16.xpose.msra.mxu0 0
        %1213 = vmatprep.subr.bf16.mxu0 0
        %1214 = vmatpush1.bf16.xpose.msra.mxu0 0
        %1215 = vmatprep.subr.bf16.mxu0 0
        %1216 = vmatpush1.bf16.xpose.msra.mxu0 0
        %1217 = vmatprep.subr.bf16.mxu0 0
        %1218 = vmatpush1.bf16.xpose.msra.mxu0 0
        %1219 = vmatprep.subr.bf16.mxu0 0
        %1220 = vmatpush1.bf16.xpose.msra.mxu0 0
        %1221 = vmatprep.subr.bf16.mxu0 0
        %1222 = vmatpush1.bf16.xpose.msra.mxu0 0
        %1223 = vmatprep.subr.bf16.mxu0 0
        %1224 = vmatpush1.bf16.xpose.msra.mxu0 0
        %1225 = vmatprep.subr.bf16.mxu0 0
        %1226 = vmatpush1.bf16.xpose.msra.mxu0 0
        %1227 = vmatprep.subr.bf16.mxu0 0
        %1228 = vmatpush1.bf16.xpose.msra.mxu0 0
        %1229 = vmatprep.subr.bf16.mxu0 0
        %1230 = vmatpush1.bf16.xpose.msra.mxu0 0
        %1231 = vmatprep.subr.bf16.mxu0 0
        %1232 = vmatpush1.bf16.xpose.msra.mxu0 0
        %1233 = vmatprep.mubr.bf16.mxu0 0
        %1234 = vmatmul.mubr.bf16.gmra.mrb[0].mxu0 %v1196
        %v1235 = vpop.f32.mrb[0].mxu0
        %v1236 = vadd.f32 %v733, %v1235
        %v1237 = vpop.f32.mrb[0].mxu0
        %v1238 = vpop.f32.mrb[0].mxu0
        %v1239 = vpop.f32.mrb[0].mxu0
        %1240 = vdwg.mxu0
        %1241 = vrot.lane.b32.xlu0 %v723, 112
        %v1242 = vpop.permute.xlu0 %1241
        %1243 = vrot.lane.b32.xlu0 %v723, 80
        %v1244 = vpop.permute.xlu0 %1243
        %v1246 = vsel %vm742, %v1242, 0
        %v1249 = vsel %vm742, %v1244, 0
        %1251 = vmatprep.subr.bf16.mxu0 0
        %1252 = vmatpush1.bf16.xpose.msra.mxu0 %v1249
        %1253 = vmatprep.subr.bf16.mxu0 0
        %1254 = vmatpush1.bf16.xpose.msra.mxu0 0
        %1255 = vmatprep.subr.bf16.mxu0 0
        %1256 = vmatpush1.bf16.xpose.msra.mxu0 0
        %1257 = vmatprep.subr.bf16.mxu0 0
        %1258 = vmatpush1.bf16.xpose.msra.mxu0 0
        %1259 = vmatprep.subr.bf16.mxu0 0
        %1260 = vmatpush1.bf16.xpose.msra.mxu0 0
        %1261 = vmatprep.subr.bf16.mxu0 0
        %1262 = vmatpush1.bf16.xpose.msra.mxu0 0
        %1263 = vmatprep.subr.bf16.mxu0 0
        %1264 = vmatpush1.bf16.xpose.msra.mxu0 0
        %1265 = vmatprep.subr.bf16.mxu0 0
        %1266 = vmatpush1.bf16.xpose.msra.mxu0 0
        %1267 = vmatprep.subr.bf16.mxu0 0
        %1268 = vmatpush1.bf16.xpose.msra.mxu0 0
        %1269 = vmatprep.subr.bf16.mxu0 0
        %1270 = vmatpush1.bf16.xpose.msra.mxu0 0
        %1271 = vmatprep.subr.bf16.mxu0 0
        %1272 = vmatpush1.bf16.xpose.msra.mxu0 0
        %1273 = vmatprep.subr.bf16.mxu0 0
        %1274 = vmatpush1.bf16.xpose.msra.mxu0 0
        %1275 = vmatprep.subr.bf16.mxu0 0
        %1276 = vmatpush1.bf16.xpose.msra.mxu0 0
        %1277 = vmatprep.subr.bf16.mxu0 0
        %1278 = vmatpush1.bf16.xpose.msra.mxu0 0
        %1279 = vmatprep.subr.bf16.mxu0 0
        %1280 = vmatpush1.bf16.xpose.msra.mxu0 0
        %1281 = vmatprep.subr.bf16.mxu0 0
        %1282 = vmatpush1.bf16.xpose.msra.mxu0 0
        %1283 = vmatprep.mubr.bf16.mxu0 0
        %1284 = vmatmul.mubr.bf16.gmra.mrb[0].mxu0 %v1246
        %v1285 = vpop.f32.mrb[0].mxu0
        %v1286 = vadd.f32 %v737, %v1285
        %v1287 = vpop.f32.mrb[0].mxu0
        %v1288 = vpop.f32.mrb[0].mxu0
        %v1289 = vpop.f32.mrb[0].mxu0
        %1290 = vdwg.mxu0
        %v1291 = vsel %vm742, %v1236, -inf
        %1292 = vmax.xlane.f32.xlu0 %v1291
        %v1293 = vpop.xlane.xlu0 %1292
        %v1294 = vsel %vm742, %v1286, -inf
        %1295 = vmax.xlane.f32.xlu0 %v1294
        %v1296 = vpop.xlane.xlu0 %1295
        %v1297 = vsub.f32 %v1236, %v1293
        %v1298 = vsub.f32 %v1286, %v1296
        %v1299 = vmul.f32 %v1297, 1.442695
        %v1300 = vpow.pop %v1299
        %v1301 = vmul.f32 %v1298, 1.442695
        %v1302 = vpow.pop %v1301
        %v1303 = vsel %vm742, %v1300, 0.0
        %1304 = vadd.xlane.f32.xlu0 %v1303
        %v1305 = vpop.xlane.xlu0 %1304
        %v1306 = vsel %vm742, %v1302, 0.0
        %1307 = vadd.xlane.f32.xlu0 %v1306
        %v1308 = vpop.xlane.xlu0 %1307
        %v1309 = vrcp.pop %v1305
        %v1310 = vrcp.pop %v1308
        %v1311 = vmul.f32 %v1300, %v1309
        %v1312 = vmul.f32 %v1302, %v1310
        %v1313 = vpack.c.bf16 %v1311, %v1311
        %v1314 = vpack.c.bf16 %v1312, %v1312
        %1315 = vrot.lane.b32.xlu0 %v722, 48
        %v1316 = vpop.permute.xlu0 %1315
        %v1318 = vsel %vm742, %v1313, 0
        %v1321 = vsel %vm866, %v1316, 0
        %1323 = vmatprep.subr.bf16.mxu0 0
        %1324 = vmatpush1.bf16.msra.mxu0 %v1321
        %1325 = vmatprep.subr.bf16.mxu0 0
        %1326 = vmatpush1.bf16.msra.mxu0 0
        %1327 = vmatprep.subr.bf16.mxu0 0
        %1328 = vmatpush1.bf16.msra.mxu0 0
        %1329 = vmatprep.subr.bf16.mxu0 0
        %1330 = vmatpush1.bf16.msra.mxu0 0
        %1331 = vmatprep.subr.bf16.mxu0 0
        %1332 = vmatpush1.bf16.msra.mxu0 0
        %1333 = vmatprep.subr.bf16.mxu0 0
        %1334 = vmatpush1.bf16.msra.mxu0 0
        %1335 = vmatprep.subr.bf16.mxu0 0
        %1336 = vmatpush1.bf16.msra.mxu0 0
        %1337 = vmatprep.subr.bf16.mxu0 0
        %1338 = vmatpush1.bf16.msra.mxu0 0
        %1339 = vmatprep.subr.bf16.mxu0 0
        %1340 = vmatpush1.bf16.msra.mxu0 0
        %1341 = vmatprep.subr.bf16.mxu0 0
        %1342 = vmatpush1.bf16.msra.mxu0 0
        %1343 = vmatprep.subr.bf16.mxu0 0
        %1344 = vmatpush1.bf16.msra.mxu0 0
        %1345 = vmatprep.subr.bf16.mxu0 0
        %1346 = vmatpush1.bf16.msra.mxu0 0
        %1347 = vmatprep.subr.bf16.mxu0 0
        %1348 = vmatpush1.bf16.msra.mxu0 0
        %1349 = vmatprep.subr.bf16.mxu0 0
        %1350 = vmatpush1.bf16.msra.mxu0 0
        %1351 = vmatprep.subr.bf16.mxu0 0
        %1352 = vmatpush1.bf16.msra.mxu0 0
        %1353 = vmatprep.subr.bf16.mxu0 0
        %1354 = vmatpush1.bf16.msra.mxu0 0
        %1355 = vmatprep.mubr.bf16.mxu0 0
        %1356 = vmatmul.mubr.bf16.gmra.mrb[0].mxu0 %v1318
        %v1357 = vpop.f32.mrb[0].mxu0
        %v1358 = vadd.f32 0.0, %v1357
        %v1359 = vpop.f32.mrb[0].mxu0
        %v1360 = vpop.f32.mrb[0].mxu0
        %v1361 = vpop.f32.mrb[0].mxu0
        %1362 = vdwg.mxu0
        %1363 = vrot.lane.b32.xlu0 %v723, 48
        %v1364 = vpop.permute.xlu0 %1363
        %v1366 = vsel %vm742, %v1314, 0
        %v1369 = vsel %vm866, %v1364, 0
        %1371 = vmatprep.subr.bf16.mxu0 0
        %1372 = vmatpush1.bf16.msra.mxu0 %v1369
        %1373 = vmatprep.subr.bf16.mxu0 0
        %1374 = vmatpush1.bf16.msra.mxu0 0
        %1375 = vmatprep.subr.bf16.mxu0 0
        %1376 = vmatpush1.bf16.msra.mxu0 0
        %1377 = vmatprep.subr.bf16.mxu0 0
        %1378 = vmatpush1.bf16.msra.mxu0 0
        %1379 = vmatprep.subr.bf16.mxu0 0
        %1380 = vmatpush1.bf16.msra.mxu0 0
        %1381 = vmatprep.subr.bf16.mxu0 0
        %1382 = vmatpush1.bf16.msra.mxu0 0
        %1383 = vmatprep.subr.bf16.mxu0 0
        %1384 = vmatpush1.bf16.msra.mxu0 0
        %1385 = vmatprep.subr.bf16.mxu0 0
        %1386 = vmatpush1.bf16.msra.mxu0 0
        %1387 = vmatprep.subr.bf16.mxu0 0
        %1388 = vmatpush1.bf16.msra.mxu0 0
        %1389 = vmatprep.subr.bf16.mxu0 0
        %1390 = vmatpush1.bf16.msra.mxu0 0
        %1391 = vmatprep.subr.bf16.mxu0 0
        %1392 = vmatpush1.bf16.msra.mxu0 0
        %1393 = vmatprep.subr.bf16.mxu0 0
        %1394 = vmatpush1.bf16.msra.mxu0 0
        %1395 = vmatprep.subr.bf16.mxu0 0
        %1396 = vmatpush1.bf16.msra.mxu0 0
        %1397 = vmatprep.subr.bf16.mxu0 0
        %1398 = vmatpush1.bf16.msra.mxu0 0
        %1399 = vmatprep.subr.bf16.mxu0 0
        %1400 = vmatpush1.bf16.msra.mxu0 0
        %1401 = vmatprep.subr.bf16.mxu0 0
        %1402 = vmatpush1.bf16.msra.mxu0 0
        %1403 = vmatprep.mubr.bf16.mxu0 0
        %1404 = vmatmul.mubr.bf16.gmra.mrb[0].mxu0 %v1366
        %v1405 = vpop.f32.mrb[0].mxu0
        %v1406 = vadd.f32 0.0, %v1405
        %v1407 = vpop.f32.mrb[0].mxu0
        %v1408 = vpop.f32.mrb[0].mxu0
        %v1409 = vpop.f32.mrb[0].mxu0
        %1410 = vdwg.mxu0
        %1413 = vrot.lane.b32.xlu0 %v1358, 16
        %v1414 = vpop.permute.xlu0 %1413
        %1415 = vrot.lane.b32.xlu0 %v1406, 16
        %v1416 = vpop.permute.xlu0 %1415
        %vm1419 = vcmask 195712
        %1420 = vst.msk [vmem:[#allocation2] sm:$0xff] %vm1419, %v1414
        %1421 = vst.msk [vmem:[#allocation2 + $0x8] sm:$0xff] %vm1419, %v1416
        %1422 = vrot.lane.b32.xlu0 %v722, 104
        %v1423 = vpop.permute.xlu0 %1422
        %1424 = vrot.lane.b32.xlu0 %v722, 72
        %v1425 = vpop.permute.xlu0 %1424
        %v1427 = vsel %vm742, %v1423, 0
        %v1430 = vsel %vm742, %v1425, 0
        %1432 = vmatprep.subr.bf16.mxu0 0
        %1433 = vmatpush1.bf16.xpose.msra.mxu0 %v1430
        %1434 = vmatprep.subr.bf16.mxu0 0
        %1435 = vmatpush1.bf16.xpose.msra.mxu0 0
        %1436 = vmatprep.subr.bf16.mxu0 0
        %1437 = vmatpush1.bf16.xpose.msra.mxu0 0
        %1438 = vmatprep.subr.bf16.mxu0 0
        %1439 = vmatpush1.bf16.xpose.msra.mxu0 0
        %1440 = vmatprep.subr.bf16.mxu0 0
        %1441 = vmatpush1.bf16.xpose.msra.mxu0 0
        %1442 = vmatprep.subr.bf16.mxu0 0
        %1443 = vmatpush1.bf16.xpose.msra.mxu0 0
        %1444 = vmatprep.subr.bf16.mxu0 0
        %1445 = vmatpush1.bf16.xpose.msra.mxu0 0
        %1446 = vmatprep.subr.bf16.mxu0 0
        %1447 = vmatpush1.bf16.xpose.msra.mxu0 0
        %1448 = vmatprep.subr.bf16.mxu0 0
        %1449 = vmatpush1.bf16.xpose.msra.mxu0 0
        %1450 = vmatprep.subr.bf16.mxu0 0
        %1451 = vmatpush1.bf16.xpose.msra.mxu0 0
        %1452 = vmatprep.subr.bf16.mxu0 0
        %1453 = vmatpush1.bf16.xpose.msra.mxu0 0
        %1454 = vmatprep.subr.bf16.mxu0 0
        %1455 = vmatpush1.bf16.xpose.msra.mxu0 0
        %1456 = vmatprep.subr.bf16.mxu0 0
        %1457 = vmatpush1.bf16.xpose.msra.mxu0 0
        %1458 = vmatprep.subr.bf16.mxu0 0
        %1459 = vmatpush1.bf16.xpose.msra.mxu0 0
        %1460 = vmatprep.subr.bf16.mxu0 0
        %1461 = vmatpush1.bf16.xpose.msra.mxu0 0
        %1462 = vmatprep.subr.bf16.mxu0 0
        %1463 = vmatpush1.bf16.xpose.msra.mxu0 0
        %1464 = vmatprep.mubr.bf16.mxu0 0
        %1465 = vmatmul.mubr.bf16.gmra.mrb[0].mxu0 %v1427
        %v1466 = vpop.f32.mrb[0].mxu0
        %v1467 = vadd.f32 %v733, %v1466
        %v1468 = vpop.f32.mrb[0].mxu0
        %v1469 = vpop.f32.mrb[0].mxu0
        %v1470 = vpop.f32.mrb[0].mxu0
        %1471 = vdwg.mxu0
        %1472 = vrot.lane.b32.xlu0 %v723, 104
        %v1473 = vpop.permute.xlu0 %1472
        %1474 = vrot.lane.b32.xlu0 %v723, 72
        %v1475 = vpop.permute.xlu0 %1474
        %v1477 = vsel %vm742, %v1473, 0
        %v1480 = vsel %vm742, %v1475, 0
        %1482 = vmatprep.subr.bf16.mxu0 0
        %1483 = vmatpush1.bf16.xpose.msra.mxu0 %v1480
        %1484 = vmatprep.subr.bf16.mxu0 0
        %1485 = vmatpush1.bf16.xpose.msra.mxu0 0
        %1486 = vmatprep.subr.bf16.mxu0 0
        %1487 = vmatpush1.bf16.xpose.msra.mxu0 0
        %1488 = vmatprep.subr.bf16.mxu0 0
        %1489 = vmatpush1.bf16.xpose.msra.mxu0 0
        %1490 = vmatprep.subr.bf16.mxu0 0
        %1491 = vmatpush1.bf16.xpose.msra.mxu0 0
        %1492 = vmatprep.subr.bf16.mxu0 0
        %1493 = vmatpush1.bf16.xpose.msra.mxu0 0
        %1494 = vmatprep.subr.bf16.mxu0 0
        %1495 = vmatpush1.bf16.xpose.msra.mxu0 0
        %1496 = vmatprep.subr.bf16.mxu0 0
        %1497 = vmatpush1.bf16.xpose.msra.mxu0 0
        %1498 = vmatprep.subr.bf16.mxu0 0
        %1499 = vmatpush1.bf16.xpose.msra.mxu0 0
        %1500 = vmatprep.subr.bf16.mxu0 0
        %1501 = vmatpush1.bf16.xpose.msra.mxu0 0
        %1502 = vmatprep.subr.bf16.mxu0 0
        %1503 = vmatpush1.bf16.xpose.msra.mxu0 0
        %1504 = vmatprep.subr.bf16.mxu0 0
        %1505 = vmatpush1.bf16.xpose.msra.mxu0 0
        %1506 = vmatprep.subr.bf16.mxu0 0
        %1507 = vmatpush1.bf16.xpose.msra.mxu0 0
        %1508 = vmatprep.subr.bf16.mxu0 0
        %1509 = vmatpush1.bf16.xpose.msra.mxu0 0
        %1510 = vmatprep.subr.bf16.mxu0 0
        %1511 = vmatpush1.bf16.xpose.msra.mxu0 0
        %1512 = vmatprep.subr.bf16.mxu0 0
        %1513 = vmatpush1.bf16.xpose.msra.mxu0 0
        %1514 = vmatprep.mubr.bf16.mxu0 0
        %1515 = vmatmul.mubr.bf16.gmra.mrb[0].mxu0 %v1477
        %v1516 = vpop.f32.mrb[0].mxu0
        %v1517 = vadd.f32 %v737, %v1516
        %v1518 = vpop.f32.mrb[0].mxu0
        %v1519 = vpop.f32.mrb[0].mxu0
        %v1520 = vpop.f32.mrb[0].mxu0
        %1521 = vdwg.mxu0
        %v1522 = vsel %vm742, %v1467, -inf
        %1523 = vmax.xlane.f32.xlu0 %v1522
        %v1524 = vpop.xlane.xlu0 %1523
        %v1525 = vsel %vm742, %v1517, -inf
        %1526 = vmax.xlane.f32.xlu0 %v1525
        %v1527 = vpop.xlane.xlu0 %1526
        %v1528 = vsub.f32 %v1467, %v1524
        %v1529 = vsub.f32 %v1517, %v1527
        %v1530 = vmul.f32 %v1528, 1.442695
        %v1531 = vpow.pop %v1530
        %v1532 = vmul.f32 %v1529, 1.442695
        %v1533 = vpow.pop %v1532
        %v1534 = vsel %vm742, %v1531, 0.0
        %1535 = vadd.xlane.f32.xlu0 %v1534
        %v1536 = vpop.xlane.xlu0 %1535
        %v1537 = vsel %vm742, %v1533, 0.0
        %1538 = vadd.xlane.f32.xlu0 %v1537
        %v1539 = vpop.xlane.xlu0 %1538
        %v1540 = vrcp.pop %v1536
        %v1541 = vrcp.pop %v1539
        %v1542 = vmul.f32 %v1531, %v1540
        %v1543 = vmul.f32 %v1533, %v1541
        %v1544 = vpack.c.bf16 %v1542, %v1542
        %v1545 = vpack.c.bf16 %v1543, %v1543
        %1546 = vrot.lane.b32.xlu0 %v722, 40
        %v1547 = vpop.permute.xlu0 %1546
        %v1549 = vsel %vm742, %v1544, 0
        %v1552 = vsel %vm866, %v1547, 0
        %1554 = vmatprep.subr.bf16.mxu0 0
        %1555 = vmatpush1.bf16.msra.mxu0 %v1552
        %1556 = vmatprep.subr.bf16.mxu0 0
        %1557 = vmatpush1.bf16.msra.mxu0 0
        %1558 = vmatprep.subr.bf16.mxu0 0
        %1559 = vmatpush1.bf16.msra.mxu0 0
        %1560 = vmatprep.subr.bf16.mxu0 0
        %1561 = vmatpush1.bf16.msra.mxu0 0
        %1562 = vmatprep.subr.bf16.mxu0 0
        %1563 = vmatpush1.bf16.msra.mxu0 0
        %1564 = vmatprep.subr.bf16.mxu0 0
        %1565 = vmatpush1.bf16.msra.mxu0 0
        %1566 = vmatprep.subr.bf16.mxu0 0
        %1567 = vmatpush1.bf16.msra.mxu0 0
        %1568 = vmatprep.subr.bf16.mxu0 0
        %1569 = vmatpush1.bf16.msra.mxu0 0
        %1570 = vmatprep.subr.bf16.mxu0 0
        %1571 = vmatpush1.bf16.msra.mxu0 0
        %1572 = vmatprep.subr.bf16.mxu0 0
        %1573 = vmatpush1.bf16.msra.mxu0 0
        %1574 = vmatprep.subr.bf16.mxu0 0
        %1575 = vmatpush1.bf16.msra.mxu0 0
        %1576 = vmatprep.subr.bf16.mxu0 0
        %1577 = vmatpush1.bf16.msra.mxu0 0
        %1578 = vmatprep.subr.bf16.mxu0 0
        %1579 = vmatpush1.bf16.msra.mxu0 0
        %1580 = vmatprep.subr.bf16.mxu0 0
        %1581 = vmatpush1.bf16.msra.mxu0 0
        %1582 = vmatprep.subr.bf16.mxu0 0
        %1583 = vmatpush1.bf16.msra.mxu0 0
        %1584 = vmatprep.subr.bf16.mxu0 0
        %1585 = vmatpush1.bf16.msra.mxu0 0
        %1586 = vmatprep.mubr.bf16.mxu0 0
        %1587 = vmatmul.mubr.bf16.gmra.mrb[0].mxu0 %v1549
        %v1588 = vpop.f32.mrb[0].mxu0
        %v1589 = vadd.f32 0.0, %v1588
        %v1590 = vpop.f32.mrb[0].mxu0
        %v1591 = vpop.f32.mrb[0].mxu0
        %v1592 = vpop.f32.mrb[0].mxu0
        %1593 = vdwg.mxu0
        %1594 = vrot.lane.b32.xlu0 %v723, 40
        %v1595 = vpop.permute.xlu0 %1594
        %v1597 = vsel %vm742, %v1545, 0
        %v1600 = vsel %vm866, %v1595, 0
        %1602 = vmatprep.subr.bf16.mxu0 0
        %1603 = vmatpush1.bf16.msra.mxu0 %v1600
        %1604 = vmatprep.subr.bf16.mxu0 0
        %1605 = vmatpush1.bf16.msra.mxu0 0
        %1606 = vmatprep.subr.bf16.mxu0 0
        %1607 = vmatpush1.bf16.msra.mxu0 0
        %1608 = vmatprep.subr.bf16.mxu0 0
        %1609 = vmatpush1.bf16.msra.mxu0 0
        %1610 = vmatprep.subr.bf16.mxu0 0
        %1611 = vmatpush1.bf16.msra.mxu0 0
        %1612 = vmatprep.subr.bf16.mxu0 0
        %1613 = vmatpush1.bf16.msra.mxu0 0
        %1614 = vmatprep.subr.bf16.mxu0 0
        %1615 = vmatpush1.bf16.msra.mxu0 0
        %1616 = vmatprep.subr.bf16.mxu0 0
        %1617 = vmatpush1.bf16.msra.mxu0 0
        %1618 = vmatprep.subr.bf16.mxu0 0
        %1619 = vmatpush1.bf16.msra.mxu0 0
        %1620 = vmatprep.subr.bf16.mxu0 0
        %1621 = vmatpush1.bf16.msra.mxu0 0
        %1622 = vmatprep.subr.bf16.mxu0 0
        %1623 = vmatpush1.bf16.msra.mxu0 0
        %1624 = vmatprep.subr.bf16.mxu0 0
        %1625 = vmatpush1.bf16.msra.mxu0 0
        %1626 = vmatprep.subr.bf16.mxu0 0
        %1627 = vmatpush1.bf16.msra.mxu0 0
        %1628 = vmatprep.subr.bf16.mxu0 0
        %1629 = vmatpush1.bf16.msra.mxu0 0
        %1630 = vmatprep.subr.bf16.mxu0 0
        %1631 = vmatpush1.bf16.msra.mxu0 0
        %1632 = vmatprep.subr.bf16.mxu0 0
        %1633 = vmatpush1.bf16.msra.mxu0 0
        %1634 = vmatprep.mubr.bf16.mxu0 0
        %1635 = vmatmul.mubr.bf16.gmra.mrb[0].mxu0 %v1597
        %v1636 = vpop.f32.mrb[0].mxu0
        %v1637 = vadd.f32 0.0, %v1636
        %v1638 = vpop.f32.mrb[0].mxu0
        %v1639 = vpop.f32.mrb[0].mxu0
        %v1640 = vpop.f32.mrb[0].mxu0
        %1641 = vdwg.mxu0
        %1644 = vrot.lane.b32.xlu0 %v1589, 24
        %v1645 = vpop.permute.xlu0 %1644
        %1646 = vrot.lane.b32.xlu0 %v1637, 24
        %v1647 = vpop.permute.xlu0 %1646
        %vm1650 = vcmask 261312
        %1651 = vst.msk [vmem:[#allocation2] sm:$0xff] %vm1650, %v1645
        %1652 = vst.msk [vmem:[#allocation2 + $0x8] sm:$0xff] %vm1650, %v1647
        %v1653 = vld [vmem:[#allocation2] sm:$0xff]
        %v1654 = vld [vmem:[#allocation2 + $0x8] sm:$0xff]
        %v1655 = vpack.c.bf16 %v1654, %v1653
        %v1656 = vld [vmem:[%s611] sm:$0xf]
        %v1657 = vld [vmem:[%s611 + $0x4] sm:$0xf]
        %v1658 = vld [vmem:[%s611 + $0x8] sm:$0xf]
        %v1659 = vld [vmem:[%s611 + $0xc] sm:$0xf]
        %v1660 = vld [vmem:[%s614] sm:$0x1]
        %v1662 = vlaneseq
        %v1663 = vshrl.u32 %v1662, 7
        %v1664 = vsub.s32 0, %v1663
        %v1665 = vrot.slane %v1660, %v1664
        %v1671 = vunpack.c.l.b16 %v1656
        %v1672 = vunpack.c.l.b16 %v1657
        %v1673 = vunpack.c.l.b16 %v1658
        %v1674 = vunpack.c.l.b16 %v1659
        %v1675 = vpack.c.b16 %v1672, %v1671
        %v1676 = vpack.c.b16 %v1674, %v1673
        %v1680 = vsel %vm673, %v1655, 0
        %1682 = vmatprep.subr.bf16.mxu0 0
        %1683 = vmatpush1.bf16.msra.mxu0 %v1675
        %1684 = vmatprep.subr.bf16.mxu0 0
        %1685 = vmatpush1.bf16.msra.mxu0 %v1676
        %1686 = vmatprep.subr.bf16.mxu0 0
        %1687 = vmatpush1.bf16.msra.mxu0 0
        %1688 = vmatprep.subr.bf16.mxu0 0
        %1689 = vmatpush1.bf16.msra.mxu0 0
        %1690 = vmatprep.subr.bf16.mxu0 0
        %1691 = vmatpush1.bf16.msra.mxu0 0
        %1692 = vmatprep.subr.bf16.mxu0 0
        %1693 = vmatpush1.bf16.msra.mxu0 0
        %1694 = vmatprep.subr.bf16.mxu0 0
        %1695 = vmatpush1.bf16.msra.mxu0 0
        %1696 = vmatprep.subr.bf16.mxu0 0
        %1697 = vmatpush1.bf16.msra.mxu0 0
        %1698 = vmatprep.subr.bf16.mxu0 0
        %1699 = vmatpush1.bf16.msra.mxu0 0
        %1700 = vmatprep.subr.bf16.mxu0 0
        %1701 = vmatpush1.bf16.msra.mxu0 0
        %1702 = vmatprep.subr.bf16.mxu0 0
        %1703 = vmatpush1.bf16.msra.mxu0 0
        %1704 = vmatprep.subr.bf16.mxu0 0
        %1705 = vmatpush1.bf16.msra.mxu0 0
        %1706 = vmatprep.subr.bf16.mxu0 0
        %1707 = vmatpush1.bf16.msra.mxu0 0
        %1708 = vmatprep.subr.bf16.mxu0 0
        %1709 = vmatpush1.bf16.msra.mxu0 0
        %1710 = vmatprep.subr.bf16.mxu0 0
        %1711 = vmatpush1.bf16.msra.mxu0 0
        %1712 = vmatprep.subr.bf16.mxu0 0
        %1713 = vmatpush1.bf16.msra.mxu0 0
        %1714 = vmatprep.mubr.bf16.mxu0 0
        %1715 = vmatmul.mubr.bf16.gmra.mrb[0].mxu0 %v1680
        %v1716 = vpop.f32.mrb[0].mxu0
        %v1717 = vadd.f32 %v1665, %v1716
        %v1718 = vpop.f32.mrb[0].mxu0
        %v1719 = vpop.f32.mrb[0].mxu0
        %v1720 = vadd.f32 %v1665, %v1719
        %v1721 = vpop.f32.mrb[0].mxu0
        %1722 = vdwg.mxu0
        %v1723 = vadd.f32 %v1717, %v654
        %v1724 = vadd.f32 %v1720, %v655
        %v1725 = vld [vmem:[%s617] sm:$0x1]
        %v1726 = vld [vmem:[%s620] sm:$0x1]
        %v1727 = vsel %vm673, %v1723, 0.0
        %1728 = vadd.xlane.f32.xlu0 %v1727
        %v1729 = vpop.xlane.xlu0 %1728
        %v1730 = vsel %vm673, %v1724, 0.0
        %1731 = vadd.xlane.f32.xlu0 %v1730
        %v1732 = vpop.xlane.xlu0 %1731
        %v1733 = vrcp.pop 32.0
        %v1734 = vmul.f32 %v1729, %v1733
        %v1735 = vmul.f32 %v1732, %v1733
        %v1736 = vsub.f32 %v1723, %v1734
        %v1737 = vsub.f32 %v1724, %v1735
        %v1738 = vmul.f32 %v1736, %v1736
        %v1739 = vmul.f32 %v1737, %v1737
        %v1740 = vsel %vm673, %v1738, 0.0
        %1741 = vadd.xlane.f32.xlu0 %v1740
        %v1742 = vpop.xlane.xlu0 %1741
        %v1743 = vsel %vm673, %v1739, 0.0
        %1744 = vadd.xlane.f32.xlu0 %v1743
        %v1745 = vpop.xlane.xlu0 %1744
        %v1746 = vmul.f32 %v1742, %v1733
        %v1747 = vmul.f32 %v1745, %v1733
        %v1748 = vadd.f32 %v1746, 1e-05
        %v1749 = vadd.f32 %v1747, 1e-05
        %v1750 = vrsqrt.pop %v1748
        %v1751 = vrsqrt.pop %v1749
        %v1752 = vmul.f32 %v1736, %v1750
        %v1753 = vmul.f32 %v1737, %v1751
        %v1755 = vlaneseq
        %v1756 = vshrl.u32 %v1755, 7
        %v1757 = vsub.s32 0, %v1756
        %v1758 = vrot.slane %v1725, %v1757
        %v1760 = vmul.f32 %v1752, %v1758
        %v1761 = vmul.f32 %v1753, %v1758
        %v1763 = vlaneseq
        %v1764 = vshrl.u32 %v1763, 7
        %v1765 = vsub.s32 0, %v1764
        %v1766 = vrot.slane %v1726, %v1765
        %v1768 = vadd.f32 %v1760, %v1766
        %v1769 = vadd.f32 %v1761, %v1766
        %v1770 = vpack.c.bf16 %v1769, %v1768
        %v1771 = vld [vmem:[%s625] sm:$0xf]
        %v1772 = vld [vmem:[%s625 + $0x4] sm:$0xf]
        %v1773 = vld [vmem:[%s625 + $0x8] sm:$0xf]
        %v1774 = vld [vmem:[%s625 + $0xc] sm:$0xf]
        %v1775 = vld [vmem:[%s628] sm:$0x1]
        %v1777 = vlaneseq
        %v1778 = vshrl.u32 %v1777, 7
        %v1779 = vsub.s32 0, %v1778
        %v1780 = vrot.slane %v1775, %v1779
        %v1786 = vunpack.c.l.b16 %v1771
        %v1787 = vunpack.c.l.b16 %v1772
        %v1788 = vunpack.c.l.b16 %v1773
        %v1789 = vunpack.c.l.b16 %v1774
        %v1790 = vpack.c.b16 %v1787, %v1786
        %v1791 = vpack.c.b16 %v1789, %v1788
        %v1795 = vsel %vm673, %v1770, 0
        %1797 = vmatprep.subr.bf16.mxu0 0
        %1798 = vmatpush1.bf16.msra.mxu0 %v1790
        %1799 = vmatprep.subr.bf16.mxu0 0
        %1800 = vmatpush1.bf16.msra.mxu0 %v1791
        %1801 = vmatprep.subr.bf16.mxu0 0
        %1802 = vmatpush1.bf16.msra.mxu0 0
        %1803 = vmatprep.subr.bf16.mxu0 0
        %1804 = vmatpush1.bf16.msra.mxu0 0
        %1805 = vmatprep.subr.bf16.mxu0 0
        %1806 = vmatpush1.bf16.msra.mxu0 0
        %1807 = vmatprep.subr.bf16.mxu0 0
        %1808 = vmatpush1.bf16.msra.mxu0 0
        %1809 = vmatprep.subr.bf16.mxu0 0
        %1810 = vmatpush1.bf16.msra.mxu0 0
        %1811 = vmatprep.subr.bf16.mxu0 0
        %1812 = vmatpush1.bf16.msra.mxu0 0
        %1813 = vmatprep.subr.bf16.mxu0 0
        %1814 = vmatpush1.bf16.msra.mxu0 0
        %1815 = vmatprep.subr.bf16.mxu0 0
        %1816 = vmatpush1.bf16.msra.mxu0 0
        %1817 = vmatprep.subr.bf16.mxu0 0
        %1818 = vmatpush1.bf16.msra.mxu0 0
        %1819 = vmatprep.subr.bf16.mxu0 0
        %1820 = vmatpush1.bf16.msra.mxu0 0
        %1821 = vmatprep.subr.bf16.mxu0 0
        %1822 = vmatpush1.bf16.msra.mxu0 0
        %1823 = vmatprep.subr.bf16.mxu0 0
        %1824 = vmatpush1.bf16.msra.mxu0 0
        %1825 = vmatprep.subr.bf16.mxu0 0
        %1826 = vmatpush1.bf16.msra.mxu0 0
        %1827 = vmatprep.subr.bf16.mxu0 0
        %1828 = vmatpush1.bf16.msra.mxu0 0
        %1829 = vmatprep.mubr.bf16.mxu0 0
        %1830 = vmatmul.mubr.bf16.gmra.mrb[0].mxu0 %v1795
        %v1831 = vpop.f32.mrb[0].mxu0
        %v1832 = vadd.f32 %v1780, %v1831
        %v1833 = vpop.f32.mrb[0].mxu0
        %v1834 = vpop.f32.mrb[0].mxu0
        %v1835 = vadd.f32 %v1780, %v1834
        %v1836 = vpop.f32.mrb[0].mxu0
        %1837 = vdwg.mxu0
        %v1838 = vmax.f32 %v1832, 0.0
        %v1839 = vmax.f32 %v1835, 0.0
        %v1840 = vpack.c.bf16 %v1839, %v1838
        %v1841 = vld [vmem:[%s633] sm:$0xf]
        %v1842 = vld [vmem:[%s633 + $0x4] sm:$0xf]
        %v1843 = vld [vmem:[%s633 + $0x8] sm:$0xf]
        %v1844 = vld [vmem:[%s633 + $0xc] sm:$0xf]
        %v1845 = vld [vmem:[%s633 + $0x10] sm:$0xf]
        %v1846 = vld [vmem:[%s633 + $0x14] sm:$0xf]
        %v1847 = vld [vmem:[%s633 + $0x18] sm:$0xf]
        %v1848 = vld [vmem:[%s633 + $0x1c] sm:$0xf]
        %v1849 = vld [vmem:[%s633 + $0x20] sm:$0xf]
        %v1850 = vld [vmem:[%s633 + $0x24] sm:$0xf]
        %v1851 = vld [vmem:[%s633 + $0x28] sm:$0xf]
        %v1852 = vld [vmem:[%s633 + $0x2c] sm:$0xf]
        %v1853 = vld [vmem:[%s633 + $0x30] sm:$0xf]
        %v1854 = vld [vmem:[%s633 + $0x34] sm:$0xf]
        %v1855 = vld [vmem:[%s633 + $0x38] sm:$0xf]
        %v1856 = vld [vmem:[%s633 + $0x3c] sm:$0xf]
        %v1857 = vld [vmem:[%s636] sm:$0x1]
        %v1859 = vlaneseq
        %v1860 = vshrl.u32 %v1859, 7
        %v1861 = vsub.s32 0, %v1860
        %v1862 = vrot.slane %v1857, %v1861
        %v1880 = vunpack.c.l.b16 %v1841
        %v1881 = vunpack.c.l.b16 %v1842
        %v1882 = vunpack.c.l.b16 %v1843
        %v1883 = vunpack.c.l.b16 %v1844
        %v1884 = vunpack.c.l.b16 %v1845
        %v1885 = vunpack.c.l.b16 %v1846
        %v1886 = vunpack.c.l.b16 %v1847
        %v1887 = vunpack.c.l.b16 %v1848
        %v1888 = vunpack.c.l.b16 %v1849
        %v1889 = vunpack.c.l.b16 %v1850
        %v1890 = vunpack.c.l.b16 %v1851
        %v1891 = vunpack.c.l.b16 %v1852
        %v1892 = vunpack.c.l.b16 %v1853
        %v1893 = vunpack.c.l.b16 %v1854
        %v1894 = vunpack.c.l.b16 %v1855
        %v1895 = vunpack.c.l.b16 %v1856
        %v1896 = vpack.c.b16 %v1881, %v1880
        %v1897 = vpack.c.b16 %v1883, %v1882
        %v1898 = vpack.c.b16 %v1885, %v1884
        %v1899 = vpack.c.b16 %v1887, %v1886
        %v1900 = vpack.c.b16 %v1889, %v1888
        %v1901 = vpack.c.b16 %v1891, %v1890
        %v1902 = vpack.c.b16 %v1893, %v1892
        %v1903 = vpack.c.b16 %v1895, %v1894
        %1912 = vmatprep.subr.bf16.mxu0 0
        %1913 = vmatpush1.bf16.msra.mxu0 %v1896
        %1914 = vmatprep.subr.bf16.mxu0 0
        %1915 = vmatpush1.bf16.msra.mxu0 %v1897
        %1916 = vmatprep.subr.bf16.mxu0 0
        %1917 = vmatpush1.bf16.msra.mxu0 %v1898
        %1918 = vmatprep.subr.bf16.mxu0 0
        %1919 = vmatpush1.bf16.msra.mxu0 %v1899
        %1920 = vmatprep.subr.bf16.mxu0 0
        %1921 = vmatpush1.bf16.msra.mxu0 %v1900
        %1922 = vmatprep.subr.bf16.mxu0 0
        %1923 = vmatpush1.bf16.msra.mxu0 %v1901
        %1924 = vmatprep.subr.bf16.mxu0 0
        %1925 = vmatpush1.bf16.msra.mxu0 %v1902
        %1926 = vmatprep.subr.bf16.mxu0 0
        %1927 = vmatpush1.bf16.msra.mxu0 %v1903
        %1928 = vmatprep.subr.bf16.mxu0 0
        %1929 = vmatpush1.bf16.msra.mxu0 0
        %1930 = vmatprep.subr.bf16.mxu0 0
        %1931 = vmatpush1.bf16.msra.mxu0 0
        %1932 = vmatprep.subr.bf16.mxu0 0
        %1933 = vmatpush1.bf16.msra.mxu0 0
        %1934 = vmatprep.subr.bf16.mxu0 0
        %1935 = vmatpush1.bf16.msra.mxu0 0
        %1936 = vmatprep.subr.bf16.mxu0 0
        %1937 = vmatpush1.bf16.msra.mxu0 0
        %1938 = vmatprep.subr.bf16.mxu0 0
        %1939 = vmatpush1.bf16.msra.mxu0 0
        %1940 = vmatprep.subr.bf16.mxu0 0
        %1941 = vmatpush1.bf16.msra.mxu0 0
        %1942 = vmatprep.subr.bf16.mxu0 0
        %1943 = vmatpush1.bf16.msra.mxu0 0
        %1944 = vmatprep.mubr.bf16.mxu0 0
        %1945 = vmatmul.mubr.bf16.gmra.mrb[0].mxu0 %v1840
        %v1946 = vpop.f32.mrb[0].mxu0
        %v1947 = vadd.f32 %v1862, %v1946
        %v1948 = vpop.f32.mrb[0].mxu0
        %v1949 = vpop.f32.mrb[0].mxu0
        %v1950 = vadd.f32 %v1862, %v1949
        %v1951 = vpop.f32.mrb[0].mxu0
        %1952 = vdwg.mxu0
        %v1953 = vadd.f32 %v1947, %v1768
        %v1954 = vadd.f32 %v1950, %v1769
        %v1955 = vld [vmem:[%s639] sm:$0x1]
        %v1956 = vld [vmem:[%s642] sm:$0x1]
        %v1957 = vsel %vm673, %v1953, 0.0
        %1958 = vadd.xlane.f32.xlu0 %v1957
        %v1959 = vpop.xlane.xlu0 %1958
        %v1960 = vsel %vm673, %v1954, 0.0
        %1961 = vadd.xlane.f32.xlu0 %v1960
        %v1962 = vpop.xlane.xlu0 %1961
        %v1963 = vmul.f32 %v1959, %v1733
        %v1964 = vmul.f32 %v1962, %v1733
        %v1965 = vsub.f32 %v1953, %v1963
        %v1966 = vsub.f32 %v1954, %v1964
        %v1967 = vmul.f32 %v1965, %v1965
        %v1968 = vmul.f32 %v1966, %v1966
        %v1969 = vsel %vm673, %v1967, 0.0
        %1970 = vadd.xlane.f32.xlu0 %v1969
        %v1971 = vpop.xlane.xlu0 %1970
        %v1972 = vsel %vm673, %v1968, 0.0
        %1973 = vadd.xlane.f32.xlu0 %v1972
        %v1974 = vpop.xlane.xlu0 %1973
        %v1975 = vmul.f32 %v1971, %v1733
        %v1976 = vmul.f32 %v1974, %v1733
        %v1977 = vadd.f32 %v1975, 1e-05
        %v1978 = vadd.f32 %v1976, 1e-05
        %v1979 = vrsqrt.pop %v1977
        %v1980 = vrsqrt.pop %v1978
        %v1981 = vmul.f32 %v1965, %v1979
        %v1982 = vmul.f32 %v1966, %v1980
        %v1984 = vlaneseq
        %v1985 = vshrl.u32 %v1984, 7
        %v1986 = vsub.s32 0, %v1985
        %v1987 = vrot.slane %v1955, %v1986
        %v1989 = vmul.f32 %v1981, %v1987
        %v1990 = vmul.f32 %v1982, %v1987
        %v1992 = vlaneseq
        %v1993 = vshrl.u32 %v1992, 7
        %v1994 = vsub.s32 0, %v1993
        %v1995 = vrot.slane %v1956, %v1994
        %v1997 = vadd.f32 %v1989, %v1995
        %v1998 = vadd.f32 %v1990, %v1995
        %1999 = vst.msk [vmem:[#allocation3] sm:$0xff] %vm673, %v1997
        %2000 = vst.msk [vmem:[#allocation3 + $0x8] sm:$0xff] %vm673, %v1998
        // Predicated region
        $region77: #{tpu_custom_call.1} parent=71 // pred_check
          %p2001 = pneg %p393
        $region78: #{tpu_custom_call.1} parent=71 // pred_check_branch
          %2003 = sbr.rel (%p2001) target = $region80
        $region79: #{tpu_custom_call.1} parent=71 // pred_region
          %s2004 = smul.u32 2, %s29
          %s2006 = ssub.s32 256, 256
          %2007 = vsyncadd [#allocation4], %s2006
          %s2008 = smul.addr %s2004, 128
          %s2009 = scalar_lea.hbm %s13, %s2008
          %s2010 = sshll.u32 [#allocation3], 4
          %s2011 = int_to_ptr.vmem [resolvable:$true] %s2010
          %2016 = dma.vmem_to_hbm [thread:$0]  %s2011, 256, %s2009, [#allocation4], 128, 128, 8
        $region80: #{tpu_custom_call.1} parent=71 // pred_fallthru
          _
        // Predicated region
        $region81: #{tpu_custom_call.1} parent=71 // pred_check
          %p2017 = pneg %p393
        $region82: #{tpu_custom_call.1} parent=71 // pred_check_branch
          %2019 = sbr.rel (%p2017) target = $region84
        $region83: #{tpu_custom_call.1} parent=71 // pred_region
          %2020 = dma.done [#allocation4], 256
        $region84: #{tpu_custom_call.1} parent=71 // pred_fallthru
          _
      $region72: #{tpu_custom_call.1} parent=5 // pred_fallthru
        _
      %p2021 = scmp.le.s32.totalorder 2, %s20
      // Predicated region
      $region85: #{tpu_custom_call.1} parent=5 // pred_check
        %p2022 = pneg %p2021
      $region86: #{tpu_custom_call.1} parent=5 // pred_check_branch
        %2024 = sbr.rel (%p2022) target = $region88
      $region87: #{tpu_custom_call.1} parent=5 // pred_region
        %s2025 = ssub.s32 %s20, 2
      $region88: #{tpu_custom_call.1} parent=5 // pred_fallthru
        _
    $region6: #{tpu_custom_call.1} parent=1 // loop_footer
      %s24 = sadd.s32 1, %s20
    $region7: #{tpu_custom_call.1} parent=1 // loop_footer_branch
      %19 = sbr.rel target = $region3
    $region8: #{tpu_custom_call.1} parent=1 // loop_exit
      _
    %2026 = vsyncpa [#allocation4], 1
    %s2027 = scalar_lea.sflag [#allocation4], 1
    %2028 = vsyncpa %s2027, 1

</llo_original>
